<compile_context>
chip_gen: v5e
topology: v5e:2x2
jax: 0.10.0
libtpu: 0.0.40
codegen_flags: <defaults>
</compile_context>

<pallas_src>
import functools

import jax
import jax.numpy as jnp
from jax import lax
from jax.experimental import pallas as pl
from jax.experimental.pallas import tpu as pltpu

_LANES = 128
_SUBLANES = 8


def _round_up(x, m):
    return ((x + m - 1) // m) * m


def _vmem_capacity_bytes():
    try:
        return int(pltpu.get_tpu_info().vmem_capacity_bytes)
    except Exception:
        return 64 * 1024 * 1024      # conservative (v7x-sized) fallback


def _dsconv_kernel(x_hbm, dw_ref, dwb_ref, pw_ref, pwb_ref, o_ref, xbuf, sem,
                   *, K, stride, tile_h, chunk_h, Wo):
    """One (batch, row-strip) grid step of the fused DSConv.

    x_hbm : (N, Hp, Wp, Cin_p) padded NHWC input, left in HBM (pl.ANY)
    dw_ref : (K, K, Cin_p)     depthwise weights        (VMEM, resident)
    dwb_ref: (1, Cin_p)        depthwise bias
    pw_ref : (Cin_p, Cout_p)   pointwise (1x1) weights
    pwb_ref: (1, Cout_p)       pointwise bias
    o_ref  : (tile_h, Wo, Cout_p)  output strip          (VMEM, auto-pipelined)
    xbuf   : (2, strip_in_h, Wp, Cin_p) manual input double buffer (scratch)
    sem    : (2,) DMA semaphores
    """
    n = pl.program_id(0)
    t = pl.program_id(1)
    num_strips = pl.num_programs(1)
    strip_in_h = (tile_h - 1) * stride + K
    slot = t % 2

    def strip_copy(strip_idx, slot_idx):
        row0 = strip_idx * (tile_h * stride)
        return pltpu.make_async_copy(
            x_hbm.at[n, pl.ds(row0, strip_in_h)], xbuf.at[slot_idx],
            sem.at[slot_idx])

    # First strip of each image: nothing is in flight yet, fetch it now.
    @pl.when(t == 0)
    def _():
        strip_copy(0, 0).start()

    strip_copy(t, slot).wait()

    # Prefetch the next strip of this image while computing the current one.
    # (The strip axis is "arbitrary", so step t+1 runs on this same core.)
    @pl.when(t + 1 < num_strips)
    def _():
        strip_copy(t + 1, 1 - slot).start()

    C = xbuf.shape[-1]
    # Hoisted parameter loads/casts (JAX does not CSE these inside the loops).
    dw_f = dw_ref[...].astype(jnp.float32)      # (K, K, C)
    dwb_f = dwb_ref[...].astype(jnp.float32)    # (1, C)
    pwb_f = pwb_ref[...].astype(jnp.float32)    # (1, Cout_p)
    mxu_dtype = pw_ref.dtype

    # Row-chunked fused compute: each chunk's f32 accumulator stays small
    # (~256 flattened rows) and feeds the MXU immediately — no full-strip
    # f32 intermediate bouncing through VMEM.
    for c in range(tile_h // chunk_h):
        r0 = c * chunk_h                        # static output-row offset
        acc = jnp.zeros((chunk_h, Wo, C), jnp.float32)
        for kh in range(K):
            for kw in range(K):
                if stride == 1:
                    patch = xbuf[slot, pl.ds(r0 + kh, chunk_h),
                                 pl.ds(kw, Wo), :]
                else:
                    # TODO(synk): if the vld slot saturates for stride==2,
                    # switch to a wrapper-side even/odd W split so these tap
                    # loads become contiguous.
                    patch = xbuf[slot,
                                 pl.ds(r0 * stride + kh, chunk_h, stride),
                                 pl.ds(kw, Wo, stride), :]
                acc = acc + patch.astype(jnp.float32) * dw_f[kh, kw]
        acc = jnp.maximum(acc + dwb_f, 0.0)                         # ReLU

        # Pointwise 1x1 conv == (chunk rows, Cin_p) x (Cin_p, Cout_p) on MXU.
        # Wo is a multiple of 8 and C a multiple of 128 -> reshape is a view.
        lhs = acc.reshape(chunk_h * Wo, C).astype(mxu_dtype)
        z = jnp.dot(lhs, pw_ref[...], preferred_element_type=jnp.float32)
        z = jnp.maximum(z + pwb_f, 0.0)                             # ReLU
        o_ref[pl.ds(r0, chunk_h), :, :] = (
            z.reshape(chunk_h, Wo, z.shape[-1]).astype(o_ref.dtype))


def dsconv_pallas_nhwc(x_nhwc, dw, dwb, pw, pwb, *, kernel_size, stride,
                       padding, tile_h=32, mxu_dtype=None):
    """NHWC entry point: (N, H, W, Cin) -> (N, Ho, Wo, Cout)."""
    N, H, W, Cin = x_nhwc.shape
    Cout = pw.shape[-1]
    K = kernel_size

    Ho = (H + 2 * padding - K) // stride + 1
    Wo = (W + 2 * padding - K) // stride + 1

    Cin_p = _round_up(Cin, _LANES)
    Cout_p = _round_up(Cout, _LANES)
    Wo_p = _round_up(Wo, _SUBLANES)      # free reshape views inside the kernel
    Wp = (Wo_p - 1) * stride + K

    if mxu_dtype is None:
        # Keep f32 x f32 (exact) for f32 inputs by default; v6e/v7x callers
        # should pass mxu_dtype=jnp.bfloat16 for the fast bf16 MXU path.
        mxu_dtype = x_nhwc.dtype

    x_bytes = jnp.dtype(x_nhwc.dtype).itemsize
    w_bytes = jnp.dtype(mxu_dtype).itemsize

    # ---- tile selection -----------------------------------------------------
    # chunk_h: output rows per MXU call, ~256 flattened rows of (rows, Cin_p)
    # (balance between vreg-resident accumulator and a well-filled MXU pass).
    chunk_h = max(1, min(Ho, 256 // Wo_p))
    tile_h = max(chunk_h, min(tile_h, Ho))
    tile_h = _round_up(tile_h, chunk_h)
    # v7x has 2 TensorCores: keep at least 2 grid steps so both stay busy.
    if N * pl.cdiv(Ho, tile_h) < 2 and tile_h > chunk_h:
        tile_h = _round_up(pl.cdiv(Ho, 2), chunk_h)

    vmem_limit = min(_vmem_capacity_bytes() * 3 // 4, 96 * 1024 * 1024)
    vmem_budget = int(vmem_limit * 0.6)        # headroom for compiler scratch

    def footprint(th):
        sih = (th - 1) * stride + K
        return (2 * sih * Wp * Cin_p * x_bytes               # input dbl buffer
                + 2 * th * Wo_p * Cout_p * x_bytes           # output dbl buffer
                + 2 * (K * K + 1) * Cin_p * 4                # depthwise params
                + 2 * (Cin_p * Cout_p * w_bytes + Cout_p * 4)  # pointwise params
                + chunk_h * Wo_p * (Cin_p + Cout_p) * 4)     # live chunk values

    while tile_h > chunk_h and footprint(tile_h) > vmem_budget:
        tile_h -= chunk_h

    num_strips = pl.cdiv(Ho, tile_h)
    Ho_pad = num_strips * tile_h
    strip_in_h = (tile_h - 1) * stride + K
    Hp = (Ho_pad - 1) * stride + K

    # ---- one padding pass: spatial halo + lane padding together ------------
    x_pad = jnp.pad(
        x_nhwc,
        ((0, 0),
         (padding, max(0, Hp - padding - H)),
         (padding, max(0, Wp - padding - W)),
         (0, Cin_p - Cin)))
    x_pad = x_pad[:, :Hp, :Wp, :]    # crop rows/cols the conv never reads

    dw_p = jnp.pad(dw, ((0, 0), (0, 0), (0, Cin_p - Cin)))
    dwb_p = jnp.pad(dwb, ((0, 0), (0, Cin_p - Cin)))
    pw_p = jnp.pad(pw, ((0, Cin_p - Cin), (0, Cout_p - Cout))).astype(mxu_dtype)
    pwb_p = jnp.pad(pwb, ((0, 0), (0, Cout_p - Cout)))

    kernel = functools.partial(
        _dsconv_kernel, K=K, stride=stride, tile_h=tile_h, chunk_h=chunk_h,
        Wo=Wo_p)

    out = pl.pallas_call(
        kernel,
        out_shape=jax.ShapeDtypeStruct((N, Ho_pad, Wo_p, Cout_p), x_nhwc.dtype),
        grid_spec=pltpu.PrefetchScalarGridSpec(
            num_scalar_prefetch=0,
            grid=(N, num_strips),
            in_specs=[
                # Activation stays in HBM; overlapping halo strips are DMA'd
                # manually (BlockSpec tiling cannot express the overlap).
                pl.BlockSpec(memory_space=pl.ANY),
                # Parameters: constant block index -> fetched once, resident.
                # TODO(synk): on v7x, single-buffer these (pl.Buffered(1)) to
                # reclaim VMEM for larger strips.
                pl.BlockSpec((K, K, Cin_p), lambda n, t: (0, 0, 0)),
                pl.BlockSpec((1, Cin_p), lambda n, t: (0, 0)),
                pl.BlockSpec((Cin_p, Cout_p), lambda n, t: (0, 0)),
                pl.BlockSpec((1, Cout_p), lambda n, t: (0, 0)),
            ],
            out_specs=pl.BlockSpec((None, tile_h, Wo_p, Cout_p),
                                   lambda n, t: (n, t, 0, 0)),
            scratch_shapes=[
                pltpu.VMEM((2, strip_in_h, Wp, Cin_p), x_nhwc.dtype),
                pltpu.SemaphoreType.DMA((2,)),
            ]),
        compiler_params=pltpu.CompilerParams(
            # Strips must stay sequential per image (manual cross-step
            # prefetch); batches split across cores on megacore parts.
            dimension_semantics=("parallel", "arbitrary"),
            vmem_limit_bytes=vmem_limit),
    )(x_pad, dw_p, dwb_p, pw_p, pwb_p)

    return out[:, :Ho, :Wo, :Cout]


def dsconv_pallas(x_nchw, dw, dwb, pw, pwb, *, kernel_size, stride, padding,
                  tile_h=32, mxu_dtype=None):
    """NCHW wrapper matching the PyTorch module: (N,Cin,H,W) -> (N,Cout,Ho,Wo).

    NHWC pipelines should call dsconv_pallas_nhwc directly and skip these two
    transposes (each is a full HBM round trip of the activation).
    """
    x_nhwc = jnp.transpose(x_nchw, (0, 2, 3, 1))
    out = dsconv_pallas_nhwc(x_nhwc, dw, dwb, pw, pwb, kernel_size=kernel_size,
                             stride=stride, padding=padding, tile_h=tile_h,
                             mxu_dtype=mxu_dtype)
    return jnp.transpose(out, (0, 3, 1, 2))


def dsconv_reference(x_nchw, dw, dwb, pw, pwb, *, kernel_size, stride, padding):
    """Pure-JAX reference (NHWC convs) for correctness checking."""
    Cin = x_nchw.shape[1]
    x = jnp.transpose(x_nchw, (0, 2, 3, 1))                      # NHWC
    dw_hwio = dw.reshape(kernel_size, kernel_size, 1, Cin)       # depthwise
    y = lax.conv_general_dilated(
        x, dw_hwio, window_strides=(stride, stride),
        padding=[(padding, padding), (padding, padding)],
        dimension_numbers=("NHWC", "HWIO", "NHWC"),
        feature_group_count=Cin)
    y = jnp.maximum(y + dwb.reshape(1, 1, 1, -1), 0.0)
    z = jnp.einsum("nhwc,co->nhwo", y, pw) + pwb.reshape(1, 1, 1, -1)
    z = jnp.maximum(z, 0.0)
    return jnp.transpose(z, (0, 3, 1, 2))


if __name__ == "__main__":
    # Small shapes consistent with the module.
    N, Cin, Cout, H, W = 2, 4, 8, 16, 16
    K, stride, padding = 3, 1, 1

    key = jax.random.PRNGKey(0)
    k1, k2, k3, k4, k5 = jax.random.split(key, 5)

    x = jax.random.normal(k1, (N, Cin, H, W), dtype=jnp.float32)

    # Parameter layouts (match the nn.Conv2d params):
    #   depthwise weight (Cin,1,K,K) -> stored (K,K,Cin);     bias (1,Cin)
    #   pointwise weight (Cout,Cin,1,1) -> stored (Cin,Cout); bias (1,Cout)
    dw = 0.1 * jax.random.normal(k2, (K, K, Cin), dtype=jnp.float32)
    dwb = 0.1 * jax.random.normal(k3, (1, Cin), dtype=jnp.float32)
    pw = 0.1 * jax.random.normal(k4, (Cin, Cout), dtype=jnp.float32)
    pwb = 0.1 * jax.random.normal(k5, (1, Cout), dtype=jnp.float32)

    # TODO(synk): batch_norm=True branch (BatchNorm2d running stats) not
    # implemented; this reproduces the default DSConv(batch_norm=False) path.

    ref = dsconv_reference(x, dw, dwb, pw, pwb,
                           kernel_size=K, stride=stride, padding=padding)

    # Exact path (f32-fed MXU).
    out = dsconv_pallas(x, dw, dwb, pw, pwb,
                        kernel_size=K, stride=stride, padding=padding)
    out = jax.block_until_ready(out)
    assert out.shape == (N, Cout, H, W), out.shape
    assert jnp.allclose(out, ref, atol=1e-5, rtol=1e-5), \
        float(jnp.max(jnp.abs(out - ref)))

    # bf16-fed MXU path (the v6e/v7x-recommended configuration): looser tol.
    out_bf16 = dsconv_pallas(x, dw, dwb, pw, pwb,
                             kernel_size=K, stride=stride, padding=padding,
                             mxu_dtype=jnp.bfloat16)
    out_bf16 = jax.block_until_ready(out_bf16)
    assert jnp.allclose(out_bf16, ref, atol=5e-2, rtol=5e-2), \
        float(jnp.max(jnp.abs(out_bf16 - ref)))

    print("KERNEL_OK")
</pallas_src>

<mosaic_0001>
module attributes {stable_mosaic.version = 11 : i64} {
  func.func @_dsconv_kernel(%arg0: i32, %arg1: i32, %arg2: memref<2x18x18x128xf32, #tpu.memory_space<any>>, %arg3: memref<3x3x128xf32, #tpu.memory_space<vmem>>, %arg4: memref<1x128xf32, #tpu.memory_space<vmem>>, %arg5: memref<128x128xf32, #tpu.memory_space<vmem>>, %arg6: memref<1x128xf32, #tpu.memory_space<vmem>>, %arg7: memref<1x16x16x128xf32, #tpu.memory_space<vmem>>, %arg8: memref<2x18x18x128xf32, #tpu.memory_space<vmem>>, %arg9: memref<2x!tpu.dma_semaphore, #tpu.memory_space<semaphore_mem>>) attributes {dimension_semantics = [#tpu.dimension_semantics<parallel>, #tpu.dimension_semantics<arbitrary>], iteration_bounds = array<i64: 2, 1>, scalar_prefetch = 0 : i64, scratch_operands = 2 : i64, tpu.core_type = #tpu.core_type<tc>, window_params = [{}, {pipeline_mode = #tpu.pipeline_mode<synchronous>, transform_indices = @transform_1, window_bounds = array<i64: 3, 3, 128>}, {pipeline_mode = #tpu.pipeline_mode<synchronous>, transform_indices = @transform_2, window_bounds = array<i64: 1, 128>}, {pipeline_mode = #tpu.pipeline_mode<synchronous>, transform_indices = @transform_3, window_bounds = array<i64: 128, 128>}, {pipeline_mode = #tpu.pipeline_mode<synchronous>, transform_indices = @transform_4, window_bounds = array<i64: 1, 128>}, {transform_indices = @transform_5, window_bounds = array<i64: 1, 16, 16, 128>}]} {
    %c2_i32 = arith.constant 2 : i32
    %c0_i32 = arith.constant 0 : i32
    %0 = arith.cmpi eq, %c2_i32, %c0_i32 : i32
    %c1_i32 = arith.constant 1 : i32
    %1 = arith.select %0, %c1_i32, %c2_i32 : i32
    %2 = arith.remsi %arg1, %1 : i32
    %c0_i32_0 = arith.constant 0 : i32
    %3 = arith.cmpi ne, %2, %c0_i32_0 : i32
    %c0_i32_1 = arith.constant 0 : i32
    %4 = arith.cmpi slt, %2, %c0_i32_1 : i32
    %c0_i32_2 = arith.constant 0 : i32
    %5 = arith.cmpi slt, %1, %c0_i32_2 : i32
    %6 = arith.xori %4, %5 : i1
    %7 = arith.andi %6, %3 : i1
    %8 = arith.addi %2, %1 : i32
    %9 = arith.select %7, %8, %2 : i32
    %c0_i32_3 = arith.constant 0 : i32
    %10 = arith.cmpi eq, %arg1, %c0_i32_3 : i32
    %11 = arith.extui %10 : i1 to i32
    %c0_i32_4 = arith.constant 0 : i32
    %12 = arith.cmpi ne, %11, %c0_i32_4 : i32
    scf.if %12 {
      %c0_i32_53 = arith.constant 0 : i32
      %c0_i32_54 = arith.constant 0 : i32
      %c0_i32_55 = arith.constant 0 : i32
      %c0_i32_56 = arith.constant 0 : i32
      %c0_i32_57 = arith.constant 0 : i32
      %125 = tpu.memref_slice %arg2[%arg0, %c0_i32_55, %c0_i32_56, %c0_i32_57] : memref<2x18x18x128xf32, #tpu.memory_space<any>> -> memref<1x18x18x128xf32, #tpu.memory_space<any>>
      %126 = tpu.memref_squeeze %125 : memref<1x18x18x128xf32, #tpu.memory_space<any>> -> memref<18x18x128xf32, #tpu.memory_space<any>>
      %c0_i32_58 = arith.constant 0 : i32
      %c0_i32_59 = arith.constant 0 : i32
      %c0_i32_60 = arith.constant 0 : i32
      %127 = tpu.memref_slice %arg8[%c0_i32_53, %c0_i32_58, %c0_i32_59, %c0_i32_60] : memref<2x18x18x128xf32, #tpu.memory_space<vmem>> -> memref<1x18x18x128xf32, #tpu.memory_space<vmem>>
      %128 = tpu.memref_squeeze %127 : memref<1x18x18x128xf32, #tpu.memory_space<vmem>> -> memref<18x18x128xf32, #tpu.memory_space<vmem>>
      %129 = tpu.memref_slice %arg9[%c0_i32_54] : memref<2x!tpu.dma_semaphore, #tpu.memory_space<semaphore_mem>> -> memref<1x!tpu.dma_semaphore, #tpu.memory_space<semaphore_mem>>
      %130 = tpu.memref_squeeze %129 : memref<1x!tpu.dma_semaphore, #tpu.memory_space<semaphore_mem>> -> memref<!tpu.dma_semaphore, #tpu.memory_space<semaphore_mem>>
      tpu.enqueue_dma source(%126 : memref<18x18x128xf32, #tpu.memory_space<any>>) target(%128 : memref<18x18x128xf32, #tpu.memory_space<vmem>>) target_semaphore(%130 : memref<!tpu.dma_semaphore, #tpu.memory_space<semaphore_mem>>)
    } else {
    }
    %c16_i32 = arith.constant 16 : i32
    %13 = arith.muli %arg1, %c16_i32 : i32
    %c0_i32_5 = arith.constant 0 : i32
    %c0_i32_6 = arith.constant 0 : i32
    %14 = tpu.memref_slice %arg2[%arg0, %13, %c0_i32_5, %c0_i32_6] : memref<2x18x18x128xf32, #tpu.memory_space<any>> -> memref<1x18x18x128xf32, #tpu.memory_space<any>>
    %15 = tpu.memref_squeeze %14 : memref<1x18x18x128xf32, #tpu.memory_space<any>> -> memref<18x18x128xf32, #tpu.memory_space<any>>
    %c0_i32_7 = arith.constant 0 : i32
    %c0_i32_8 = arith.constant 0 : i32
    %c0_i32_9 = arith.constant 0 : i32
    %16 = tpu.memref_slice %arg8[%9, %c0_i32_7, %c0_i32_8, %c0_i32_9] : memref<2x18x18x128xf32, #tpu.memory_space<vmem>> -> memref<1x18x18x128xf32, #tpu.memory_space<vmem>>
    %17 = tpu.memref_squeeze %16 : memref<1x18x18x128xf32, #tpu.memory_space<vmem>> -> memref<18x18x128xf32, #tpu.memory_space<vmem>>
    %18 = tpu.memref_slice %arg9[%9] : memref<2x!tpu.dma_semaphore, #tpu.memory_space<semaphore_mem>> -> memref<1x!tpu.dma_semaphore, #tpu.memory_space<semaphore_mem>>
    %19 = tpu.memref_squeeze %18 : memref<1x!tpu.dma_semaphore, #tpu.memory_space<semaphore_mem>> -> memref<!tpu.dma_semaphore, #tpu.memory_space<semaphore_mem>>
    tpu.wait_dma2 semaphore(%19 : memref<!tpu.dma_semaphore, #tpu.memory_space<semaphore_mem>>) src(%15 : memref<18x18x128xf32, #tpu.memory_space<any>>) dst(%17 : memref<18x18x128xf32, #tpu.memory_space<vmem>>)
    %c1_i32_10 = arith.constant 1 : i32
    %20 = arith.addi %arg1, %c1_i32_10 : i32
    %c1_i32_11 = arith.constant 1 : i32
    %21 = arith.cmpi slt, %20, %c1_i32_11 : i32
    %22 = arith.extui %21 : i1 to i32
    %c0_i32_12 = arith.constant 0 : i32
    %23 = arith.cmpi ne, %22, %c0_i32_12 : i32
    scf.if %23 {
      %c1_i32_53 = arith.constant 1 : i32
      %125 = arith.addi %arg1, %c1_i32_53 : i32
      %c1_i32_54 = arith.constant 1 : i32
      %126 = arith.subi %c1_i32_54, %9 : i32
      %c16_i32_55 = arith.constant 16 : i32
      %127 = arith.muli %125, %c16_i32_55 : i32
      %c0_i32_56 = arith.constant 0 : i32
      %c0_i32_57 = arith.constant 0 : i32
      %128 = tpu.memref_slice %arg2[%arg0, %127, %c0_i32_56, %c0_i32_57] : memref<2x18x18x128xf32, #tpu.memory_space<any>> -> memref<1x18x18x128xf32, #tpu.memory_space<any>>
      %129 = tpu.memref_squeeze %128 : memref<1x18x18x128xf32, #tpu.memory_space<any>> -> memref<18x18x128xf32, #tpu.memory_space<any>>
      %c0_i32_58 = arith.constant 0 : i32
      %c0_i32_59 = arith.constant 0 : i32
      %c0_i32_60 = arith.constant 0 : i32
      %130 = tpu.memref_slice %arg8[%126, %c0_i32_58, %c0_i32_59, %c0_i32_60] : memref<2x18x18x128xf32, #tpu.memory_space<vmem>> -> memref<1x18x18x128xf32, #tpu.memory_space<vmem>>
      %131 = tpu.memref_squeeze %130 : memref<1x18x18x128xf32, #tpu.memory_space<vmem>> -> memref<18x18x128xf32, #tpu.memory_space<vmem>>
      %132 = tpu.memref_slice %arg9[%126] : memref<2x!tpu.dma_semaphore, #tpu.memory_space<semaphore_mem>> -> memref<1x!tpu.dma_semaphore, #tpu.memory_space<semaphore_mem>>
      %133 = tpu.memref_squeeze %132 : memref<1x!tpu.dma_semaphore, #tpu.memory_space<semaphore_mem>> -> memref<!tpu.dma_semaphore, #tpu.memory_space<semaphore_mem>>
      tpu.enqueue_dma source(%129 : memref<18x18x128xf32, #tpu.memory_space<any>>) target(%131 : memref<18x18x128xf32, #tpu.memory_space<vmem>>) target_semaphore(%133 : memref<!tpu.dma_semaphore, #tpu.memory_space<semaphore_mem>>)
    } else {
    }
    %c0 = arith.constant 0 : index
    %c0_13 = arith.constant 0 : index
    %c0_14 = arith.constant 0 : index
    %24 = vector.load %arg3[%c0, %c0_13, %c0_14] : memref<3x3x128xf32, #tpu.memory_space<vmem>>, vector<3x3x128xf32>
    %c0_15 = arith.constant 0 : index
    %c0_16 = arith.constant 0 : index
    %25 = vector.load %arg4[%c0_15, %c0_16] : memref<1x128xf32, #tpu.memory_space<vmem>>, vector<1x128xf32>
    %c0_17 = arith.constant 0 : index
    %c0_18 = arith.constant 0 : index
    %26 = vector.load %arg6[%c0_17, %c0_18] : memref<1x128xf32, #tpu.memory_space<vmem>>, vector<1x128xf32>
    %cst = arith.constant 0.000000e+00 : f32
    %27 = vector.broadcast %cst : f32 to vector<16x16x128xf32>
    %28 = arith.index_cast %9 : i32 to index
    %c0_19 = arith.constant 0 : index
    %c0_20 = arith.constant 0 : index
    %c0_21 = arith.constant 0 : index
    %29 = vector.load %arg8[%28, %c0_19, %c0_20, %c0_21] : memref<2x18x18x128xf32, #tpu.memory_space<vmem>>, vector<1x16x16x128xf32>
    %30 = vector.shape_cast %29 : vector<1x16x16x128xf32> to vector<16x16x128xf32>
    %31 = vector.extract_strided_slice %24 {offsets = [0, 0, 0], sizes = [1, 1, 128], strides = [1, 1, 1]} : vector<3x3x128xf32> to vector<1x1x128xf32>
    %32 = vector.shape_cast %31 : vector<1x1x128xf32> to vector<128xf32>
    %33 = vector.shape_cast %32 : vector<128xf32> to vector<1x1x128xf32>
    %34 = vector.broadcast %33 : vector<1x1x128xf32> to vector<16x16x128xf32>
    %35 = arith.mulf %30, %34 : vector<16x16x128xf32>
    %36 = arith.addf %27, %35 : vector<16x16x128xf32>
    %37 = arith.index_cast %9 : i32 to index
    %c0_22 = arith.constant 0 : index
    %c1 = arith.constant 1 : index
    %c0_23 = arith.constant 0 : index
    %38 = vector.load %arg8[%37, %c0_22, %c1, %c0_23] : memref<2x18x18x128xf32, #tpu.memory_space<vmem>>, vector<1x16x16x128xf32>
    %39 = vector.shape_cast %38 : vector<1x16x16x128xf32> to vector<16x16x128xf32>
    %40 = vector.extract_strided_slice %24 {offsets = [0, 1, 0], sizes = [1, 1, 128], strides = [1, 1, 1]} : vector<3x3x128xf32> to vector<1x1x128xf32>
    %41 = vector.shape_cast %40 : vector<1x1x128xf32> to vector<128xf32>
    %42 = vector.shape_cast %41 : vector<128xf32> to vector<1x1x128xf32>
    %43 = vector.broadcast %42 : vector<1x1x128xf32> to vector<16x16x128xf32>
    %44 = arith.mulf %39, %43 : vector<16x16x128xf32>
    %45 = arith.addf %36, %44 : vector<16x16x128xf32>
    %46 = arith.index_cast %9 : i32 to index
    %c0_24 = arith.constant 0 : index
    %c2 = arith.constant 2 : index
    %c0_25 = arith.constant 0 : index
    %47 = vector.load %arg8[%46, %c0_24, %c2, %c0_25] : memref<2x18x18x128xf32, #tpu.memory_space<vmem>>, vector<1x16x16x128xf32>
    %48 = vector.shape_cast %47 : vector<1x16x16x128xf32> to vector<16x16x128xf32>
    %49 = vector.extract_strided_slice %24 {offsets = [0, 2, 0], sizes = [1, 1, 128], strides = [1, 1, 1]} : vector<3x3x128xf32> to vector<1x1x128xf32>
    %50 = vector.shape_cast %49 : vector<1x1x128xf32> to vector<128xf32>
    %51 = vector.shape_cast %50 : vector<128xf32> to vector<1x1x128xf32>
    %52 = vector.broadcast %51 : vector<1x1x128xf32> to vector<16x16x128xf32>
    %53 = arith.mulf %48, %52 : vector<16x16x128xf32>
    %54 = arith.addf %45, %53 : vector<16x16x128xf32>
    %55 = arith.index_cast %9 : i32 to index
    %c1_26 = arith.constant 1 : index
    %c0_27 = arith.constant 0 : index
    %c0_28 = arith.constant 0 : index
    %56 = vector.load %arg8[%55, %c1_26, %c0_27, %c0_28] : memref<2x18x18x128xf32, #tpu.memory_space<vmem>>, vector<1x16x16x128xf32>
    %57 = vector.shape_cast %56 : vector<1x16x16x128xf32> to vector<16x16x128xf32>
    %58 = vector.extract_strided_slice %24 {offsets = [1, 0, 0], sizes = [1, 1, 128], strides = [1, 1, 1]} : vector<3x3x128xf32> to vector<1x1x128xf32>
    %59 = vector.shape_cast %58 : vector<1x1x128xf32> to vector<128xf32>
    %60 = vector.shape_cast %59 : vector<128xf32> to vector<1x1x128xf32>
    %61 = vector.broadcast %60 : vector<1x1x128xf32> to vector<16x16x128xf32>
    %62 = arith.mulf %57, %61 : vector<16x16x128xf32>
    %63 = arith.addf %54, %62 : vector<16x16x128xf32>
    %64 = arith.index_cast %9 : i32 to index
    %c1_29 = arith.constant 1 : index
    %c1_30 = arith.constant 1 : index
    %c0_31 = arith.constant 0 : index
    %65 = vector.load %arg8[%64, %c1_29, %c1_30, %c0_31] : memref<2x18x18x128xf32, #tpu.memory_space<vmem>>, vector<1x16x16x128xf32>
    %66 = vector.shape_cast %65 : vector<1x16x16x128xf32> to vector<16x16x128xf32>
    %67 = vector.extract_strided_slice %24 {offsets = [1, 1, 0], sizes = [1, 1, 128], strides = [1, 1, 1]} : vector<3x3x128xf32> to vector<1x1x128xf32>
    %68 = vector.shape_cast %67 : vector<1x1x128xf32> to vector<128xf32>
    %69 = vector.shape_cast %68 : vector<128xf32> to vector<1x1x128xf32>
    %70 = vector.broadcast %69 : vector<1x1x128xf32> to vector<16x16x128xf32>
    %71 = arith.mulf %66, %70 : vector<16x16x128xf32>
    %72 = arith.addf %63, %71 : vector<16x16x128xf32>
    %73 = arith.index_cast %9 : i32 to index
    %c1_32 = arith.constant 1 : index
    %c2_33 = arith.constant 2 : index
    %c0_34 = arith.constant 0 : index
    %74 = vector.load %arg8[%73, %c1_32, %c2_33, %c0_34] : memref<2x18x18x128xf32, #tpu.memory_space<vmem>>, vector<1x16x16x128xf32>
    %75 = vector.shape_cast %74 : vector<1x16x16x128xf32> to vector<16x16x128xf32>
    %76 = vector.extract_strided_slice %24 {offsets = [1, 2, 0], sizes = [1, 1, 128], strides = [1, 1, 1]} : vector<3x3x128xf32> to vector<1x1x128xf32>
    %77 = vector.shape_cast %76 : vector<1x1x128xf32> to vector<128xf32>
    %78 = vector.shape_cast %77 : vector<128xf32> to vector<1x1x128xf32>
    %79 = vector.broadcast %78 : vector<1x1x128xf32> to vector<16x16x128xf32>
    %80 = arith.mulf %75, %79 : vector<16x16x128xf32>
    %81 = arith.addf %72, %80 : vector<16x16x128xf32>
    %82 = arith.index_cast %9 : i32 to index
    %c2_35 = arith.constant 2 : index
    %c0_36 = arith.constant 0 : index
    %c0_37 = arith.constant 0 : index
    %83 = vector.load %arg8[%82, %c2_35, %c0_36, %c0_37] : memref<2x18x18x128xf32, #tpu.memory_space<vmem>>, vector<1x16x16x128xf32>
    %84 = vector.shape_cast %83 : vector<1x16x16x128xf32> to vector<16x16x128xf32>
    %85 = vector.extract_strided_slice %24 {offsets = [2, 0, 0], sizes = [1, 1, 128], strides = [1, 1, 1]} : vector<3x3x128xf32> to vector<1x1x128xf32>
    %86 = vector.shape_cast %85 : vector<1x1x128xf32> to vector<128xf32>
    %87 = vector.shape_cast %86 : vector<128xf32> to vector<1x1x128xf32>
    %88 = vector.broadcast %87 : vector<1x1x128xf32> to vector<16x16x128xf32>
    %89 = arith.mulf %84, %88 : vector<16x16x128xf32>
    %90 = arith.addf %81, %89 : vector<16x16x128xf32>
    %91 = arith.index_cast %9 : i32 to index
    %c2_38 = arith.constant 2 : index
    %c1_39 = arith.constant 1 : index
    %c0_40 = arith.constant 0 : index
    %92 = vector.load %arg8[%91, %c2_38, %c1_39, %c0_40] : memref<2x18x18x128xf32, #tpu.memory_space<vmem>>, vector<1x16x16x128xf32>
    %93 = vector.shape_cast %92 : vector<1x16x16x128xf32> to vector<16x16x128xf32>
    %94 = vector.extract_strided_slice %24 {offsets = [2, 1, 0], sizes = [1, 1, 128], strides = [1, 1, 1]} : vector<3x3x128xf32> to vector<1x1x128xf32>
    %95 = vector.shape_cast %94 : vector<1x1x128xf32> to vector<128xf32>
    %96 = vector.shape_cast %95 : vector<128xf32> to vector<1x1x128xf32>
    %97 = vector.broadcast %96 : vector<1x1x128xf32> to vector<16x16x128xf32>
    %98 = arith.mulf %93, %97 : vector<16x16x128xf32>
    %99 = arith.addf %90, %98 : vector<16x16x128xf32>
    %100 = arith.index_cast %9 : i32 to index
    %c2_41 = arith.constant 2 : index
    %c2_42 = arith.constant 2 : index
    %c0_43 = arith.constant 0 : index
    %101 = vector.load %arg8[%100, %c2_41, %c2_42, %c0_43] : memref<2x18x18x128xf32, #tpu.memory_space<vmem>>, vector<1x16x16x128xf32>
    %102 = vector.shape_cast %101 : vector<1x16x16x128xf32> to vector<16x16x128xf32>
    %103 = vector.extract_strided_slice %24 {offsets = [2, 2, 0], sizes = [1, 1, 128], strides = [1, 1, 1]} : vector<3x3x128xf32> to vector<1x1x128xf32>
    %104 = vector.shape_cast %103 : vector<1x1x128xf32> to vector<128xf32>
    %105 = vector.shape_cast %104 : vector<128xf32> to vector<1x1x128xf32>
    %106 = vector.broadcast %105 : vector<1x1x128xf32> to vector<16x16x128xf32>
    %107 = arith.mulf %102, %106 : vector<16x16x128xf32>
    %108 = arith.addf %99, %107 : vector<16x16x128xf32>
    %109 = vector.shape_cast %25 : vector<1x128xf32> to vector<1x1x128xf32>
    %110 = vector.broadcast %109 : vector<1x1x128xf32> to vector<16x16x128xf32>
    %111 = arith.addf %108, %110 : vector<16x16x128xf32>
    %cst_44 = arith.constant 0.000000e+00 : f32
    %112 = vector.broadcast %cst_44 : f32 to vector<16x16x128xf32>
    %113 = arith.maximumf %111, %112 : vector<16x16x128xf32>
    %114 = vector.shape_cast %113 : vector<16x16x128xf32> to vector<256x128xf32>
    %c0_45 = arith.constant 0 : index
    %c0_46 = arith.constant 0 : index
    %115 = vector.load %arg5[%c0_45, %c0_46] : memref<128x128xf32, #tpu.memory_space<vmem>>, vector<128x128xf32>
    %cst_47 = arith.constant dense<0.000000e+00> : vector<256x128xf32>
    %116 = tpu.matmul %114, %115, %cst_47 {dimension_numbers = #tpu.dot_dimension_numbers<[1], [0], [0], [1], [0, 0, 1, 1], [], []>} : vector<256x128xf32>, vector<128x128xf32>, vector<256x128xf32> -> vector<256x128xf32>
    %117 = vector.broadcast %26 : vector<1x128xf32> to vector<256x128xf32>
    %118 = arith.addf %116, %117 : vector<256x128xf32>
    %cst_48 = arith.constant 0.000000e+00 : f32
    %119 = vector.broadcast %cst_48 : f32 to vector<256x128xf32>
    %120 = arith.maximumf %118, %119 : vector<256x128xf32>
    %121 = vector.shape_cast %120 : vector<256x128xf32> to vector<16x16x128xf32>
    %c0_49 = arith.constant 0 : index
    %c0_50 = arith.constant 0 : index
    %c0_51 = arith.constant 0 : index
    %c0_52 = arith.constant 0 : index
    %122 = vector.load %arg7[%c0_49, %c0_50, %c0_51, %c0_52] : memref<1x16x16x128xf32, #tpu.memory_space<vmem>>, vector<1x16x16x128xf32>
    %123 = vector.shape_cast %122 : vector<1x16x16x128xf32> to vector<16x16x128xf32>
    %124 = vector.shape_cast %121 : vector<16x16x128xf32> to vector<1x16x16x128xf32>
    tpu.vector_store %arg7[%c0_49, %c0_50, %c0_51, %c0_52], %124 {strides = array<i32>} : memref<1x16x16x128xf32, #tpu.memory_space<vmem>>, vector<1x16x16x128xf32>,
    return
  }
  func.func @transform_1(%arg0: i32, %arg1: i32) -> (i32, i32, i32) {
    %c0_i32 = arith.constant 0 : i32
    %c0_i32_0 = arith.constant 0 : i32
    %c0_i32_1 = arith.constant 0 : i32
    %c0_i32_2 = arith.constant 0 : i32
    return %c0_i32, %c0_i32_0, %c0_i32_1 : i32, i32, i32
  }
  func.func @transform_2(%arg0: i32, %arg1: i32) -> (i32, i32) {
    %c0_i32 = arith.constant 0 : i32
    %c0_i32_0 = arith.constant 0 : i32
    %c0_i32_1 = arith.constant 0 : i32
    return %c0_i32, %c0_i32_0 : i32, i32
  }
  func.func @transform_3(%arg0: i32, %arg1: i32) -> (i32, i32) {
    %c0_i32 = arith.constant 0 : i32
    %c0_i32_0 = arith.constant 0 : i32
    %c0_i32_1 = arith.constant 0 : i32
    return %c0_i32, %c0_i32_0 : i32, i32
  }
  func.func @transform_4(%arg0: i32, %arg1: i32) -> (i32, i32) {
    %c0_i32 = arith.constant 0 : i32
    %c0_i32_0 = arith.constant 0 : i32
    %c0_i32_1 = arith.constant 0 : i32
    return %c0_i32, %c0_i32_0 : i32, i32
  }
  func.func @transform_5(%arg0: i32, %arg1: i32) -> (i32, i32, i32, i32) {
    %c0_i32 = arith.constant 0 : i32
    %c0_i32_0 = arith.constant 0 : i32
    %c0_i32_1 = arith.constant 0 : i32
    return %arg0, %arg1, %c0_i32, %c0_i32_0 : i32, i32, i32, i32
  }
}

</mosaic_0001>

<llo_original>
// kernel: tpu_custom_call.1
$region0: #{tpu_custom_call.1}
  #allocation0 [shape = 'u32[]', space=smem, size = 0x4, offset = 0x4, fixed_abs, tag = 'smem constant byte address 0x4 - core index']
  #allocation1 [shape = 'u32[72,128]{1,0:T(1,128)}', space=vmem, size = 0x9000, scoped, tag = 'internal scratch']
  #allocation2 [shape = 'f32[2,18,18,128]{3,2,1,0:T(8,128)}', space=vmem, size = 0x6c000, scoped, tag = 'scratch operand']
  #allocation3 [shape = 's32[2]{0}', space=sflag, size = 0x8, scoped, tag = 'scratch operand']
  #allocation6 [shape = 's32[]', space=sflag, size = 0x4, offset = 0, fixed_abs, tag = 'sflag constant byte address 0x0 - dummy sync flag']
  #allocation7 [shape = 's32[]', space=sflag, size = 0x4, offset = 0, fixed_abs, tag = 'sflag constant byte address 0x0 - dummy sync flag']
  %s0 = inlined_call_operand.vmem [shape: f32[2,18,18,128], index: 0, kind: input, shape index: {}]
  %s1 = inlined_call_operand.vmem [shape: f32[3,3,128], index: 1, kind: input, shape index: {}]
  %s2 = inlined_call_operand.vmem [shape: f32[1,128], index: 2, kind: input, shape index: {}]
  %s3 = inlined_call_operand.vmem [shape: f32[128,128], index: 3, kind: input, shape index: {}]
  %s4 = inlined_call_operand.vmem [shape: f32[1,128], index: 4, kind: input, shape index: {}]
  %s5 = inlined_call_operand.hbm [shape: f32[2,16,16,128], index: 5, kind: output, shape index: {}]
  %s6 = sld [smem:[#allocation0]]
  $region101: #{tpu_custom_call.1} parent=0
    _
  %s8 = ssub.s32 1, %s6
  %s9 = scalar_select 0, %s8, %s6
  $region1: #{tpu_custom_call.1} parent=0
    #allocation4 [shape = 'u8[262144]{0}', space=vmem, size = 0x40000, scoped, tag = 'output window, operand 0']
    #allocation5 [shape = 's32[2]{0}', space=sflag, size = 0x8, scoped, tag = 'scoped memory for tpu_custom_call.1']
    %10 = vsyncpa [#allocation5], 0
    %s11 = scalar_lea.sflag [#allocation5], 1
    %12 = vsyncpa %s11, 0
    loop: start=0, step=1, limit=4
    $region2: #{tpu_custom_call.1} parent=1 // loop_pre_header
      _
    $region3: #{tpu_custom_call.1} parent=1 // loop_header
      %s14 = sphi 0, %s18
      %p15 = scmp.ge.s32.totalorder %s14, 4
      %s21 = sphi 0, %s33
      %s22 = sphi 0, %s29
      %s23 = sphi 0, %s21
      %s24 = sphi 0, %s22
      %s25 = sphi 0, %s23
      %s26 = sphi 0, %s24
      %s34 = sphi 0, %s34
      %s36 = sphi 0, %s34
      %s37 = sphi 0, %s36
      %s51 = sphi 0, %s37
      %s55 = sphi 0, %s55
      %s57 = sphi 0, %s55
      %s58 = sphi 0, %s57
      %s72 = sphi 0, %s58
      %s76 = sphi 0, %s76
      %s78 = sphi 0, %s76
      %s79 = sphi 0, %s78
      %s93 = sphi 0, %s79
      %s97 = sphi 0, %s97
      %s99 = sphi 0, %s97
      %s100 = sphi 0, %s99
      %s114 = sphi 0, %s100
      %s122 = sphi 0, %s124
      %s125 = sphi 0, %s122
      %s126 = sphi 0, %s125
      %s142 = sphi 0, %s126
    $region4: #{tpu_custom_call.1} parent=1 // loop_header_branch
      %17 = sbr.rel (%p15) target = $region8
    $region5: #{tpu_custom_call.1} parent=1 // loop_body
      %s19 = ssub.s32 %s14, 1
      %s20 = ssub.s32 %s14, 2
      %s27 = sadd.s32 1, %s22
      %p28 = scmp.ge.s32.totalorder %s27, 1
      %s29 = scalar_select %p28, 0, %s27
      %s30 = sadd.s32 1, %s21
      %s31 = scalar_select %p28, %s30, %s21
      %p32 = scmp.ge.s32.totalorder %s31, 2
      %s33 = scalar_select %p32, 0, %s31
      %s35 = sadd.s32 %s34, 1
      %p38 = scmp.eq.s32.totalorder %s14, 1
      %p39 = scmp.ne.s32.totalorder %s34, %s36
      %p40 = scmp.eq.s32.totalorder %s14, 0
      %p41 = por %p39, %p40
      %p42 = scmp.ne.s32.totalorder %s34, %s36
      %p43 = scmp.eq.s32.totalorder %s19, 1
      %p44 = por %p42, %p43
      %p45 = scmp.ne.s32.totalorder %s36, %s37
      %p46 = scmp.eq.s32.totalorder %s19, 0
      %p47 = por %p45, %p46
      %p48 = scmp.ne.s32.totalorder %s36, %s37
      %p49 = scmp.eq.s32.totalorder %s20, 1
      %p50 = por %p48, %p49
      %p52 = scmp.ne.s32.totalorder %s37, %s51
      %p53 = scmp.eq.s32.totalorder %s20, 0
      %p54 = por %p52, %p53
      %s56 = sadd.s32 %s55, 1
      %p59 = scmp.eq.s32.totalorder %s14, 1
      %p60 = scmp.ne.s32.totalorder %s55, %s57
      %p61 = scmp.eq.s32.totalorder %s14, 0
      %p62 = por %p60, %p61
      %p63 = scmp.ne.s32.totalorder %s55, %s57
      %p64 = scmp.eq.s32.totalorder %s19, 1
      %p65 = por %p63, %p64
      %p66 = scmp.ne.s32.totalorder %s57, %s58
      %p67 = scmp.eq.s32.totalorder %s19, 0
      %p68 = por %p66, %p67
      %p69 = scmp.ne.s32.totalorder %s57, %s58
      %p70 = scmp.eq.s32.totalorder %s20, 1
      %p71 = por %p69, %p70
      %p73 = scmp.ne.s32.totalorder %s58, %s72
      %p74 = scmp.eq.s32.totalorder %s20, 0
      %p75 = por %p73, %p74
      %s77 = sadd.s32 %s76, 1
      %p80 = scmp.eq.s32.totalorder %s14, 1
      %p81 = scmp.ne.s32.totalorder %s76, %s78
      %p82 = scmp.eq.s32.totalorder %s14, 0
      %p83 = por %p81, %p82
      %p84 = scmp.ne.s32.totalorder %s76, %s78
      %p85 = scmp.eq.s32.totalorder %s19, 1
      %p86 = por %p84, %p85
      %p87 = scmp.ne.s32.totalorder %s78, %s79
      %p88 = scmp.eq.s32.totalorder %s19, 0
      %p89 = por %p87, %p88
      %p90 = scmp.ne.s32.totalorder %s78, %s79
      %p91 = scmp.eq.s32.totalorder %s20, 1
      %p92 = por %p90, %p91
      %p94 = scmp.ne.s32.totalorder %s79, %s93
      %p95 = scmp.eq.s32.totalorder %s20, 0
      %p96 = por %p94, %p95
      %s98 = sadd.s32 %s97, 1
      %p101 = scmp.eq.s32.totalorder %s14, 1
      %p102 = scmp.ne.s32.totalorder %s97, %s99
      %p103 = scmp.eq.s32.totalorder %s14, 0
      %p104 = por %p102, %p103
      %p105 = scmp.ne.s32.totalorder %s97, %s99
      %p106 = scmp.eq.s32.totalorder %s19, 1
      %p107 = por %p105, %p106
      %p108 = scmp.ne.s32.totalorder %s99, %s100
      %p109 = scmp.eq.s32.totalorder %s19, 0
      %p110 = por %p108, %p109
      %p111 = scmp.ne.s32.totalorder %s99, %s100
      %p112 = scmp.eq.s32.totalorder %s20, 1
      %p113 = por %p111, %p112
      %p115 = scmp.ne.s32.totalorder %s100, %s114
      %p116 = scmp.eq.s32.totalorder %s20, 0
      %p117 = por %p115, %p116
      %s118 = ssub.s32 %s21, %s33
      %s119 = ssub.s32 %s22, %s29
      %s120 = sor.u32 %s118, %s119
      %p121 = scmp.eq.s32.totalorder %s120, 0
      %s123 = sadd.s32 %s122, 1
      %s124 = scalar_select %p121, %s122, %s123
      %p127 = pneg %p121
      %p128 = scmp.eq.s32.totalorder %s14, 1
      %p129 = por %p127, %p128
      %p130 = scmp.ne.s32.totalorder %s122, %s125
      %p131 = scmp.eq.s32.totalorder %s14, 0
      %p132 = por %p130, %p131
      %p133 = scmp.ne.s32.totalorder %s122, %s125
      %p134 = scmp.eq.s32.totalorder %s19, 1
      %p135 = por %p133, %p134
      %p136 = scmp.ne.s32.totalorder %s125, %s126
      %p137 = scmp.eq.s32.totalorder %s19, 0
      %p138 = por %p136, %p137
      %p139 = scmp.ne.s32.totalorder %s125, %s126
      %p140 = scmp.eq.s32.totalorder %s20, 1
      %p141 = por %p139, %p140
      %p143 = scmp.ne.s32.totalorder %s126, %s142
      %p144 = scmp.eq.s32.totalorder %s20, 0
      %p145 = por %p143, %p144
      %p146 = scmp.le.s32.totalorder 1, %s14
      %p147 = scmp.lt.s32.totalorder %s14, 3
      %p148 = pnand %p146, %p147
      %p149 = pneg %p148
      // Predicated region
      $region9: #{tpu_custom_call.1} parent=5 // pred_check
        _
      $region10: #{tpu_custom_call.1} parent=5 // pred_check_branch
        %151 = sbr.rel (%p148) target = $region12
      $region11: #{tpu_custom_call.1} parent=5 // pred_region
        %s152 = ssub.s32 %s14, 1
        // Predicated region
        $region13: #{tpu_custom_call.1} parent=11 // pred_check
          %p153 = pneg %p47
        $region14: #{tpu_custom_call.1} parent=11 // pred_check_branch
          %155 = sbr.rel (%p153) target = $region16
        $region15: #{tpu_custom_call.1} parent=11 // pred_region
          _
        $region16: #{tpu_custom_call.1} parent=11 // pred_fallthru
          _
        // Predicated region
        $region17: #{tpu_custom_call.1} parent=11 // pred_check
          %p156 = pneg %p68
        $region18: #{tpu_custom_call.1} parent=11 // pred_check_branch
          %158 = sbr.rel (%p156) target = $region20
        $region19: #{tpu_custom_call.1} parent=11 // pred_region
          _
        $region20: #{tpu_custom_call.1} parent=11 // pred_fallthru
          _
        // Predicated region
        $region21: #{tpu_custom_call.1} parent=11 // pred_check
          %p159 = pneg %p89
        $region22: #{tpu_custom_call.1} parent=11 // pred_check_branch
          %161 = sbr.rel (%p159) target = $region24
        $region23: #{tpu_custom_call.1} parent=11 // pred_region
          _
        $region24: #{tpu_custom_call.1} parent=11 // pred_fallthru
          _
        // Predicated region
        $region25: #{tpu_custom_call.1} parent=11 // pred_check
          %p162 = pneg %p110
        $region26: #{tpu_custom_call.1} parent=11 // pred_check_branch
          %164 = sbr.rel (%p162) target = $region28
        $region27: #{tpu_custom_call.1} parent=11 // pred_region
          _
        $region28: #{tpu_custom_call.1} parent=11 // pred_fallthru
          _
      $region12: #{tpu_custom_call.1} parent=5 // pred_fallthru
        _
      %p165 = scmp.lt.s32.totalorder %s14, 2
      // Predicated region
      $region29: #{tpu_custom_call.1} parent=5 // pred_check
        %p166 = pneg %p165
      $region30: #{tpu_custom_call.1} parent=5 // pred_check_branch
        %168 = sbr.rel (%p166) target = $region32
      $region31: #{tpu_custom_call.1} parent=5 // pred_region
        _
      $region32: #{tpu_custom_call.1} parent=5 // pred_fallthru
        _
      %p169 = scmp.le.s32.totalorder 1, %s14
      %p170 = scmp.lt.s32.totalorder %s14, 3
      %p171 = pnand %p169, %p170
      %p172 = pneg %p171
      // Predicated region
      $region33: #{tpu_custom_call.1} parent=5 // pred_check
        _
      $region34: #{tpu_custom_call.1} parent=5 // pred_check_branch
        %174 = sbr.rel (%p171) target = $region36
      $region35: #{tpu_custom_call.1} parent=5 // pred_region
        %s175 = ssub.s32 %s14, 1
        %p176 = pneg %p47
        %p177 = pneg %p44
        %p178 = pneg %p68
        %p179 = pneg %p65
        %p180 = pneg %p89
        %p181 = pneg %p86
        %p182 = pneg %p110
        %p183 = pneg %p107
        %p184 = pneg %p138
        %p185 = pneg %p135
        %s186 = sand.u32 %s125, 1
        %s187 = scalar_lea.sflag [#allocation5], %s186
        %s188 = sand.u32 %s125, 1
        %s189 = smul.addr %s188, 256
        %s190 = scalar_lea.vmem [#allocation4], %s189
        %s191 = smul.u32 16, %s24
        %p192 = scmp.lt.s32.totalorder %s24, 0
        %s193 = ssub.s32 0, %s24
        %s194 = scalar_select %p192, %s193, %s24
        %s195 = sand.u32 %s194, 1
        %s196 = ssub.s32 0, %s195
        %s197 = scalar_select %p192, %s196, %s195
        %p198 = scmp.ne.s32.totalorder %s197, 0
        %p199 = scmp.lt.s32.totalorder %s197, 0
        %p200 = pnand %p199, %p198
        %p201 = pneg %p200
        %s202 = sadd.s32 %s197, 2
        %s203 = scalar_select %p201, %s202, %s197
        %p204 = scmp.eq.s32.totalorder %s24, 0
        // Predicated region
        $region37: #{tpu_custom_call.1} parent=35 // pred_check
          %p205 = pneg %p204
        $region38: #{tpu_custom_call.1} parent=35 // pred_check_branch
          %207 = sbr.rel (%p205) target = $region40
        $region39: #{tpu_custom_call.1} parent=35 // pred_region
          %s208 = smul.u32 %s23, 432
          %s209 = scalar_lea.vmem %s0, %s208
          // Predicated region
          $region41: #{tpu_custom_call.1} parent=39 // pred_check
            _
          $region42: #{tpu_custom_call.1} parent=39 // pred_check_branch
            %211 = sbr.rel (0) target = $region44
          $region43: #{tpu_custom_call.1} parent=39 // pred_region
            %s212 = scalar_lea.vmem %s209, 16
            %s213 = scalar_lea.vmem [#allocation2], 16
            loop: start=0, step=1, limit=1
            $region45: #{tpu_custom_call.1} parent=43 // loop_pre_header
              _
            $region46: #{tpu_custom_call.1} parent=43 // loop_header
              %s215 = sphi 0, %s219
              %p216 = scmp.ge.s32.totalorder %s215, 1
              %s220 = sphi %s209, %s209
              %s221 = sphi [#allocation2], [#allocation2]
            $region47: #{tpu_custom_call.1} parent=43 // loop_header_branch
              %218 = sbr.rel (%p216) target = $region51
            $region48: #{tpu_custom_call.1} parent=43 // loop_body
              %v222 = vld [vmem:[%s220] sm:$0xff]
              %223 = vst [vmem:[%s221] sm:$0xff] %v222
              %v224 = vld [vmem:[%s220 + $0x8] sm:$0xff]
              %225 = vst [vmem:[%s221 + $0x8] sm:$0xff] %v224
              %v226 = vld [vmem:[%s220 + $0x18] sm:$0xff]
              %227 = vst [vmem:[%s221 + $0x18] sm:$0xff] %v226
              %v228 = vld [vmem:[%s220 + $0x20] sm:$0xff]
              %229 = vst [vmem:[%s221 + $0x20] sm:$0xff] %v228
              %v230 = vld [vmem:[%s220 + $0x30] sm:$0xff]
              %231 = vst [vmem:[%s221 + $0x30] sm:$0xff] %v230
              %v232 = vld [vmem:[%s220 + $0x38] sm:$0xff]
              %233 = vst [vmem:[%s221 + $0x38] sm:$0xff] %v232
              %v234 = vld [vmem:[%s220 + $0x48] sm:$0xff]
              %235 = vst [vmem:[%s221 + $0x48] sm:$0xff] %v234
              %v236 = vld [vmem:[%s220 + $0x50] sm:$0xff]
              %237 = vst [vmem:[%s221 + $0x50] sm:$0xff] %v236
              %v238 = vld [vmem:[%s220 + $0x60] sm:$0xff]
              %239 = vst [vmem:[%s221 + $0x60] sm:$0xff] %v238
              %v240 = vld [vmem:[%s220 + $0x68] sm:$0xff]
              %241 = vst [vmem:[%s221 + $0x68] sm:$0xff] %v240
              %v242 = vld [vmem:[%s220 + $0x78] sm:$0xff]
              %243 = vst [vmem:[%s221 + $0x78] sm:$0xff] %v242
              %v244 = vld [vmem:[%s220 + $0x80] sm:$0xff]
              %245 = vst [vmem:[%s221 + $0x80] sm:$0xff] %v244
              %v246 = vld [vmem:[%s220 + $0x90] sm:$0xff]
              %247 = vst [vmem:[%s221 + $0x90] sm:$0xff] %v246
              %v248 = vld [vmem:[%s220 + $0x98] sm:$0xff]
              %249 = vst [vmem:[%s221 + $0x98] sm:$0xff] %v248
              %v250 = vld [vmem:[%s220 + $0xa8] sm:$0xff]
              %251 = vst [vmem:[%s221 + $0xa8] sm:$0xff] %v250
              %v252 = vld [vmem:[%s220 + $0xb0] sm:$0xff]
              %253 = vst [vmem:[%s221 + $0xb0] sm:$0xff] %v252
              %v254 = vld [vmem:[%s220 + $0xc0] sm:$0xff]
              %255 = vst [vmem:[%s221 + $0xc0] sm:$0xff] %v254
              %v256 = vld [vmem:[%s220 + $0xc8] sm:$0xff]
              %257 = vst [vmem:[%s221 + $0xc8] sm:$0xff] %v256
              %v258 = vld [vmem:[%s220 + $0xd8] sm:$0xff]
              %259 = vst [vmem:[%s221 + $0xd8] sm:$0xff] %v258
              %v260 = vld [vmem:[%s220 + $0xe0] sm:$0xff]
              %261 = vst [vmem:[%s221 + $0xe0] sm:$0xff] %v260
              %v262 = vld [vmem:[%s220 + $0xf0] sm:$0xff]
              %263 = vst [vmem:[%s221 + $0xf0] sm:$0xff] %v262
              %v264 = vld [vmem:[%s220 + $0xf8] sm:$0xff]
              %265 = vst [vmem:[%s221 + $0xf8] sm:$0xff] %v264
              %v266 = vld [vmem:[%s220 + $0x108] sm:$0xff]
              %267 = vst [vmem:[%s221 + $0x108] sm:$0xff] %v266
              %v268 = vld [vmem:[%s220 + $0x110] sm:$0xff]
              %269 = vst [vmem:[%s221 + $0x110] sm:$0xff] %v268
              %v270 = vld [vmem:[%s220 + $0x120] sm:$0xff]
              %271 = vst [vmem:[%s221 + $0x120] sm:$0xff] %v270
              %v272 = vld [vmem:[%s220 + $0x128] sm:$0xff]
              %273 = vst [vmem:[%s221 + $0x128] sm:$0xff] %v272
              %v274 = vld [vmem:[%s220 + $0x138] sm:$0xff]
              %275 = vst [vmem:[%s221 + $0x138] sm:$0xff] %v274
              %v276 = vld [vmem:[%s220 + $0x140] sm:$0xff]
              %277 = vst [vmem:[%s221 + $0x140] sm:$0xff] %v276
              %v278 = vld [vmem:[%s220 + $0x150] sm:$0xff]
              %279 = vst [vmem:[%s221 + $0x150] sm:$0xff] %v278
              %v280 = vld [vmem:[%s220 + $0x158] sm:$0xff]
              %281 = vst [vmem:[%s221 + $0x158] sm:$0xff] %v280
              %v282 = vld [vmem:[%s220 + $0x168] sm:$0xff]
              %283 = vst [vmem:[%s221 + $0x168] sm:$0xff] %v282
              %v284 = vld [vmem:[%s220 + $0x170] sm:$0xff]
              %285 = vst [vmem:[%s221 + $0x170] sm:$0xff] %v284
              %v286 = vld [vmem:[%s220 + $0x180] sm:$0xff]
              %287 = vst [vmem:[%s221 + $0x180] sm:$0xff] %v286
              %v288 = vld [vmem:[%s220 + $0x188] sm:$0xff]
              %289 = vst [vmem:[%s221 + $0x188] sm:$0xff] %v288
              %v290 = vld [vmem:[%s220 + $0x198] sm:$0xff]
              %291 = vst [vmem:[%s221 + $0x198] sm:$0xff] %v290
              %v292 = vld [vmem:[%s220 + $0x1a0] sm:$0xff]
              %293 = vst [vmem:[%s221 + $0x1a0] sm:$0xff] %v292
            $region49: #{tpu_custom_call.1} parent=43 // loop_footer
              %s219 = sadd.s32 1, %s215
            $region50: #{tpu_custom_call.1} parent=43 // loop_footer_branch
              %214 = sbr.rel target = $region46
            $region51: #{tpu_custom_call.1} parent=43 // loop_exit
              _
            %s295 = ssub.s32 4, 1
            loop: start=0, step=1, limit=1
            $region52: #{tpu_custom_call.1} parent=43 // loop_pre_header
              _
            $region53: #{tpu_custom_call.1} parent=43 // loop_header
              %s297 = sphi 0, %s301
              %p298 = scmp.ge.s32.totalorder %s297, 1
              %s302 = sphi %s212, %s212
              %s303 = sphi %s213, %s213
            $region54: #{tpu_custom_call.1} parent=43 // loop_header_branch
              %300 = sbr.rel (%p298) target = $region58
            $region55: #{tpu_custom_call.1} parent=43 // loop_body
              %v304 = vld [vmem:[%s302] sm:%s295]
              %305 = vst [vmem:[%s303] sm:%s295] %v304
              %v306 = vld [vmem:[%s302 + $0x18] sm:%s295]
              %307 = vst [vmem:[%s303 + $0x18] sm:%s295] %v306
              %v308 = vld [vmem:[%s302 + $0x30] sm:%s295]
              %309 = vst [vmem:[%s303 + $0x30] sm:%s295] %v308
              %v310 = vld [vmem:[%s302 + $0x48] sm:%s295]
              %311 = vst [vmem:[%s303 + $0x48] sm:%s295] %v310
              %v312 = vld [vmem:[%s302 + $0x60] sm:%s295]
              %313 = vst [vmem:[%s303 + $0x60] sm:%s295] %v312
              %v314 = vld [vmem:[%s302 + $0x78] sm:%s295]
              %315 = vst [vmem:[%s303 + $0x78] sm:%s295] %v314
              %v316 = vld [vmem:[%s302 + $0x90] sm:%s295]
              %317 = vst [vmem:[%s303 + $0x90] sm:%s295] %v316
              %v318 = vld [vmem:[%s302 + $0xa8] sm:%s295]
              %319 = vst [vmem:[%s303 + $0xa8] sm:%s295] %v318
              %v320 = vld [vmem:[%s302 + $0xc0] sm:%s295]
              %321 = vst [vmem:[%s303 + $0xc0] sm:%s295] %v320
              %v322 = vld [vmem:[%s302 + $0xd8] sm:%s295]
              %323 = vst [vmem:[%s303 + $0xd8] sm:%s295] %v322
              %v324 = vld [vmem:[%s302 + $0xf0] sm:%s295]
              %325 = vst [vmem:[%s303 + $0xf0] sm:%s295] %v324
              %v326 = vld [vmem:[%s302 + $0x108] sm:%s295]
              %327 = vst [vmem:[%s303 + $0x108] sm:%s295] %v326
              %v328 = vld [vmem:[%s302 + $0x120] sm:%s295]
              %329 = vst [vmem:[%s303 + $0x120] sm:%s295] %v328
              %v330 = vld [vmem:[%s302 + $0x138] sm:%s295]
              %331 = vst [vmem:[%s303 + $0x138] sm:%s295] %v330
              %v332 = vld [vmem:[%s302 + $0x150] sm:%s295]
              %333 = vst [vmem:[%s303 + $0x150] sm:%s295] %v332
              %v334 = vld [vmem:[%s302 + $0x168] sm:%s295]
              %335 = vst [vmem:[%s303 + $0x168] sm:%s295] %v334
              %v336 = vld [vmem:[%s302 + $0x180] sm:%s295]
              %337 = vst [vmem:[%s303 + $0x180] sm:%s295] %v336
              %v338 = vld [vmem:[%s302 + $0x198] sm:%s295]
              %339 = vst [vmem:[%s303 + $0x198] sm:%s295] %v338
            $region56: #{tpu_custom_call.1} parent=43 // loop_footer
              %s301 = sadd.s32 1, %s297
            $region57: #{tpu_custom_call.1} parent=43 // loop_footer_branch
              %296 = sbr.rel target = $region53
            $region58: #{tpu_custom_call.1} parent=43 // loop_exit
              _
          $region44: #{tpu_custom_call.1} parent=39 // pred_fallthru
            _
          // Predicated region
          $region59: #{tpu_custom_call.1} parent=39 // pred_check
            _
          $region60: #{tpu_custom_call.1} parent=39 // pred_check_branch
            %342 = sbr.rel (0) target = $region62
          $region61: #{tpu_custom_call.1} parent=39 // pred_region
            %343 = vsyncadd [#allocation3], 5184
          $region62: #{tpu_custom_call.1} parent=39 // pred_fallthru
            _
        $region40: #{tpu_custom_call.1} parent=35 // pred_fallthru
          _
        %s344 = scalar_lea.sflag [#allocation3], %s203
        %s345 = smul.u32 18, 18
        %s346 = smul.u32 %s345, 1
        %s347 = sshll.u32 %s346, 4
        %348 = dma.done %s344, %s347
        %s349 = sadd.s32 %s24, 1
        %p350 = scmp.lt.s32.totalorder %s349, 1
        // Predicated region
        $region63: #{tpu_custom_call.1} parent=35 // pred_check
          %p351 = pneg %p350
        $region64: #{tpu_custom_call.1} parent=35 // pred_check_branch
          %353 = sbr.rel (%p351) target = $region66
        $region65: #{tpu_custom_call.1} parent=35 // pred_region
          %s354 = ssub.s32 1, %s203
          %s355 = smul.u32 %s349, 16
          %s356 = smul.u32 %s355, 24
          %s357 = smul.u32 %s23, 432
          %s358 = sadd.s32 %s356, %s357
          %s359 = scalar_lea.vmem %s0, %s358
          %s360 = smul.u32 %s354, 432
          %s361 = scalar_lea.vmem [#allocation2], %s360
          %s362 = scalar_lea.sflag [#allocation3], %s354
          // Predicated region
          $region67: #{tpu_custom_call.1} parent=65 // pred_check
            _
          $region68: #{tpu_custom_call.1} parent=65 // pred_check_branch
            %364 = sbr.rel (0) target = $region70
          $region69: #{tpu_custom_call.1} parent=65 // pred_region
            %s365 = scalar_lea.vmem %s359, 16
            %s366 = scalar_lea.vmem %s361, 16 [#allocation2]
            loop: start=0, step=1, limit=1
            $region71: #{tpu_custom_call.1} parent=69 // loop_pre_header
              _
            $region72: #{tpu_custom_call.1} parent=69 // loop_header
              %s368 = sphi 0, %s372
              %p369 = scmp.ge.s32.totalorder %s368, 1
              %s373 = sphi %s359, %s359
              %s374 = sphi %s361, %s361
            $region73: #{tpu_custom_call.1} parent=69 // loop_header_branch
              %371 = sbr.rel (%p369) target = $region77
            $region74: #{tpu_custom_call.1} parent=69 // loop_body
              %v375 = vld [vmem:[%s373] sm:$0xff]
              %376 = vst [vmem:[%s374] sm:$0xff] %v375
              %v377 = vld [vmem:[%s373 + $0x8] sm:$0xff]
              %378 = vst [vmem:[%s374 + $0x8] sm:$0xff] %v377
              %v379 = vld [vmem:[%s373 + $0x18] sm:$0xff]
              %380 = vst [vmem:[%s374 + $0x18] sm:$0xff] %v379
              %v381 = vld [vmem:[%s373 + $0x20] sm:$0xff]
              %382 = vst [vmem:[%s374 + $0x20] sm:$0xff] %v381
              %v383 = vld [vmem:[%s373 + $0x30] sm:$0xff]
              %384 = vst [vmem:[%s374 + $0x30] sm:$0xff] %v383
              %v385 = vld [vmem:[%s373 + $0x38] sm:$0xff]
              %386 = vst [vmem:[%s374 + $0x38] sm:$0xff] %v385
              %v387 = vld [vmem:[%s373 + $0x48] sm:$0xff]
              %388 = vst [vmem:[%s374 + $0x48] sm:$0xff] %v387
              %v389 = vld [vmem:[%s373 + $0x50] sm:$0xff]
              %390 = vst [vmem:[%s374 + $0x50] sm:$0xff] %v389
              %v391 = vld [vmem:[%s373 + $0x60] sm:$0xff]
              %392 = vst [vmem:[%s374 + $0x60] sm:$0xff] %v391
              %v393 = vld [vmem:[%s373 + $0x68] sm:$0xff]
              %394 = vst [vmem:[%s374 + $0x68] sm:$0xff] %v393
              %v395 = vld [vmem:[%s373 + $0x78] sm:$0xff]
              %396 = vst [vmem:[%s374 + $0x78] sm:$0xff] %v395
              %v397 = vld [vmem:[%s373 + $0x80] sm:$0xff]
              %398 = vst [vmem:[%s374 + $0x80] sm:$0xff] %v397
              %v399 = vld [vmem:[%s373 + $0x90] sm:$0xff]
              %400 = vst [vmem:[%s374 + $0x90] sm:$0xff] %v399
              %v401 = vld [vmem:[%s373 + $0x98] sm:$0xff]
              %402 = vst [vmem:[%s374 + $0x98] sm:$0xff] %v401
              %v403 = vld [vmem:[%s373 + $0xa8] sm:$0xff]
              %404 = vst [vmem:[%s374 + $0xa8] sm:$0xff] %v403
              %v405 = vld [vmem:[%s373 + $0xb0] sm:$0xff]
              %406 = vst [vmem:[%s374 + $0xb0] sm:$0xff] %v405
              %v407 = vld [vmem:[%s373 + $0xc0] sm:$0xff]
              %408 = vst [vmem:[%s374 + $0xc0] sm:$0xff] %v407
              %v409 = vld [vmem:[%s373 + $0xc8] sm:$0xff]
              %410 = vst [vmem:[%s374 + $0xc8] sm:$0xff] %v409
              %v411 = vld [vmem:[%s373 + $0xd8] sm:$0xff]
              %412 = vst [vmem:[%s374 + $0xd8] sm:$0xff] %v411
              %v413 = vld [vmem:[%s373 + $0xe0] sm:$0xff]
              %414 = vst [vmem:[%s374 + $0xe0] sm:$0xff] %v413
              %v415 = vld [vmem:[%s373 + $0xf0] sm:$0xff]
              %416 = vst [vmem:[%s374 + $0xf0] sm:$0xff] %v415
              %v417 = vld [vmem:[%s373 + $0xf8] sm:$0xff]
              %418 = vst [vmem:[%s374 + $0xf8] sm:$0xff] %v417
              %v419 = vld [vmem:[%s373 + $0x108] sm:$0xff]
              %420 = vst [vmem:[%s374 + $0x108] sm:$0xff] %v419
              %v421 = vld [vmem:[%s373 + $0x110] sm:$0xff]
              %422 = vst [vmem:[%s374 + $0x110] sm:$0xff] %v421
              %v423 = vld [vmem:[%s373 + $0x120] sm:$0xff]
              %424 = vst [vmem:[%s374 + $0x120] sm:$0xff] %v423
              %v425 = vld [vmem:[%s373 + $0x128] sm:$0xff]
              %426 = vst [vmem:[%s374 + $0x128] sm:$0xff] %v425
              %v427 = vld [vmem:[%s373 + $0x138] sm:$0xff]
              %428 = vst [vmem:[%s374 + $0x138] sm:$0xff] %v427
              %v429 = vld [vmem:[%s373 + $0x140] sm:$0xff]
              %430 = vst [vmem:[%s374 + $0x140] sm:$0xff] %v429
              %v431 = vld [vmem:[%s373 + $0x150] sm:$0xff]
              %432 = vst [vmem:[%s374 + $0x150] sm:$0xff] %v431
              %v433 = vld [vmem:[%s373 + $0x158] sm:$0xff]
              %434 = vst [vmem:[%s374 + $0x158] sm:$0xff] %v433
              %v435 = vld [vmem:[%s373 + $0x168] sm:$0xff]
              %436 = vst [vmem:[%s374 + $0x168] sm:$0xff] %v435
              %v437 = vld [vmem:[%s373 + $0x170] sm:$0xff]
              %438 = vst [vmem:[%s374 + $0x170] sm:$0xff] %v437
              %v439 = vld [vmem:[%s373 + $0x180] sm:$0xff]
              %440 = vst [vmem:[%s374 + $0x180] sm:$0xff] %v439
              %v441 = vld [vmem:[%s373 + $0x188] sm:$0xff]
              %442 = vst [vmem:[%s374 + $0x188] sm:$0xff] %v441
              %v443 = vld [vmem:[%s373 + $0x198] sm:$0xff]
              %444 = vst [vmem:[%s374 + $0x198] sm:$0xff] %v443
              %v445 = vld [vmem:[%s373 + $0x1a0] sm:$0xff]
              %446 = vst [vmem:[%s374 + $0x1a0] sm:$0xff] %v445
            $region75: #{tpu_custom_call.1} parent=69 // loop_footer
              %s372 = sadd.s32 1, %s368
            $region76: #{tpu_custom_call.1} parent=69 // loop_footer_branch
              %367 = sbr.rel target = $region72
            $region77: #{tpu_custom_call.1} parent=69 // loop_exit
              _
            %s448 = ssub.s32 4, 1
            loop: start=0, step=1, limit=1
            $region78: #{tpu_custom_call.1} parent=69 // loop_pre_header
              _
            $region79: #{tpu_custom_call.1} parent=69 // loop_header
              %s450 = sphi 0, %s454
              %p451 = scmp.ge.s32.totalorder %s450, 1
              %s455 = sphi %s365, %s365
              %s456 = sphi %s366, %s366
            $region80: #{tpu_custom_call.1} parent=69 // loop_header_branch
              %453 = sbr.rel (%p451) target = $region84
            $region81: #{tpu_custom_call.1} parent=69 // loop_body
              %v457 = vld [vmem:[%s455] sm:%s448]
              %458 = vst [vmem:[%s456] sm:%s448] %v457
              %v459 = vld [vmem:[%s455 + $0x18] sm:%s448]
              %460 = vst [vmem:[%s456 + $0x18] sm:%s448] %v459
              %v461 = vld [vmem:[%s455 + $0x30] sm:%s448]
              %462 = vst [vmem:[%s456 + $0x30] sm:%s448] %v461
              %v463 = vld [vmem:[%s455 + $0x48] sm:%s448]
              %464 = vst [vmem:[%s456 + $0x48] sm:%s448] %v463
              %v465 = vld [vmem:[%s455 + $0x60] sm:%s448]
              %466 = vst [vmem:[%s456 + $0x60] sm:%s448] %v465
              %v467 = vld [vmem:[%s455 + $0x78] sm:%s448]
              %468 = vst [vmem:[%s456 + $0x78] sm:%s448] %v467
              %v469 = vld [vmem:[%s455 + $0x90] sm:%s448]
              %470 = vst [vmem:[%s456 + $0x90] sm:%s448] %v469
              %v471 = vld [vmem:[%s455 + $0xa8] sm:%s448]
              %472 = vst [vmem:[%s456 + $0xa8] sm:%s448] %v471
              %v473 = vld [vmem:[%s455 + $0xc0] sm:%s448]
              %474 = vst [vmem:[%s456 + $0xc0] sm:%s448] %v473
              %v475 = vld [vmem:[%s455 + $0xd8] sm:%s448]
              %476 = vst [vmem:[%s456 + $0xd8] sm:%s448] %v475
              %v477 = vld [vmem:[%s455 + $0xf0] sm:%s448]
              %478 = vst [vmem:[%s456 + $0xf0] sm:%s448] %v477
              %v479 = vld [vmem:[%s455 + $0x108] sm:%s448]
              %480 = vst [vmem:[%s456 + $0x108] sm:%s448] %v479
              %v481 = vld [vmem:[%s455 + $0x120] sm:%s448]
              %482 = vst [vmem:[%s456 + $0x120] sm:%s448] %v481
              %v483 = vld [vmem:[%s455 + $0x138] sm:%s448]
              %484 = vst [vmem:[%s456 + $0x138] sm:%s448] %v483
              %v485 = vld [vmem:[%s455 + $0x150] sm:%s448]
              %486 = vst [vmem:[%s456 + $0x150] sm:%s448] %v485
              %v487 = vld [vmem:[%s455 + $0x168] sm:%s448]
              %488 = vst [vmem:[%s456 + $0x168] sm:%s448] %v487
              %v489 = vld [vmem:[%s455 + $0x180] sm:%s448]
              %490 = vst [vmem:[%s456 + $0x180] sm:%s448] %v489
              %v491 = vld [vmem:[%s455 + $0x198] sm:%s448]
              %492 = vst [vmem:[%s456 + $0x198] sm:%s448] %v491
            $region82: #{tpu_custom_call.1} parent=69 // loop_footer
              %s454 = sadd.s32 1, %s450
            $region83: #{tpu_custom_call.1} parent=69 // loop_footer_branch
              %449 = sbr.rel target = $region79
            $region84: #{tpu_custom_call.1} parent=69 // loop_exit
              _
          $region70: #{tpu_custom_call.1} parent=65 // pred_fallthru
            _
          // Predicated region
          $region85: #{tpu_custom_call.1} parent=65 // pred_check
            _
          $region86: #{tpu_custom_call.1} parent=65 // pred_check_branch
            %495 = sbr.rel (0) target = $region88
          $region87: #{tpu_custom_call.1} parent=65 // pred_region
            %496 = vsyncadd %s362, 5184
          $region88: #{tpu_custom_call.1} parent=65 // pred_fallthru
            _
        $region66: #{tpu_custom_call.1} parent=35 // pred_fallthru
          _
        %v497 = vld [vmem:[%s1] sm:$0x7]
        %v498 = vld [vmem:[%s1 + $0x4] sm:$0x7]
        %v499 = vld [vmem:[%s1 + $0x8] sm:$0x7]
        %v500 = vld [vmem:[%s2] sm:$0x1]
        %v501 = vld [vmem:[%s4] sm:$0x1]
        %s502 = smul.u32 %s203, 432
        %s503 = scalar_lea.vmem [#allocation2], %s502
        %v504 = vld [vmem:[%s503] sm:$0xff]
        %v505 = vld [vmem:[%s503 + $0x8] sm:$0xff]
        %v506 = vld [vmem:[%s503 + $0x18] sm:$0xff]
        %v507 = vld [vmem:[%s503 + $0x20] sm:$0xff]
        %v508 = vld [vmem:[%s503 + $0x30] sm:$0xff]
        %v509 = vld [vmem:[%s503 + $0x38] sm:$0xff]
        %v510 = vld [vmem:[%s503 + $0x48] sm:$0xff]
        %v511 = vld [vmem:[%s503 + $0x50] sm:$0xff]
        %v512 = vld [vmem:[%s503 + $0x60] sm:$0xff]
        %v513 = vld [vmem:[%s503 + $0x68] sm:$0xff]
        %v514 = vld [vmem:[%s503 + $0x78] sm:$0xff]
        %v515 = vld [vmem:[%s503 + $0x80] sm:$0xff]
        %v516 = vld [vmem:[%s503 + $0x90] sm:$0xff]
        %v517 = vld [vmem:[%s503 + $0x98] sm:$0xff]
        %v518 = vld [vmem:[%s503 + $0xa8] sm:$0xff]
        %v519 = vld [vmem:[%s503 + $0xb0] sm:$0xff]
        %v520 = vld [vmem:[%s503 + $0xc0] sm:$0xff]
        %v521 = vld [vmem:[%s503 + $0xc8] sm:$0xff]
        %v522 = vld [vmem:[%s503 + $0xd8] sm:$0xff]
        %v523 = vld [vmem:[%s503 + $0xe0] sm:$0xff]
        %v524 = vld [vmem:[%s503 + $0xf0] sm:$0xff]
        %v525 = vld [vmem:[%s503 + $0xf8] sm:$0xff]
        %v526 = vld [vmem:[%s503 + $0x108] sm:$0xff]
        %v527 = vld [vmem:[%s503 + $0x110] sm:$0xff]
        %v528 = vld [vmem:[%s503 + $0x120] sm:$0xff]
        %v529 = vld [vmem:[%s503 + $0x128] sm:$0xff]
        %v530 = vld [vmem:[%s503 + $0x138] sm:$0xff]
        %v531 = vld [vmem:[%s503 + $0x140] sm:$0xff]
        %v532 = vld [vmem:[%s503 + $0x150] sm:$0xff]
        %v533 = vld [vmem:[%s503 + $0x158] sm:$0xff]
        %v534 = vld [vmem:[%s503 + $0x168] sm:$0xff]
        %v535 = vld [vmem:[%s503 + $0x170] sm:$0xff]
        %v536 = vperm.slane %v497, 0
        %v537 = vmul.f32 %v504, %v536
        %v538 = vmul.f32 %v505, %v536
        %v539 = vmul.f32 %v506, %v536
        %v540 = vmul.f32 %v507, %v536
        %v541 = vmul.f32 %v508, %v536
        %v542 = vmul.f32 %v509, %v536
        %v543 = vmul.f32 %v510, %v536
        %v544 = vmul.f32 %v511, %v536
        %v545 = vmul.f32 %v512, %v536
        %v546 = vmul.f32 %v513, %v536
        %v547 = vmul.f32 %v514, %v536
        %v548 = vmul.f32 %v515, %v536
        %v549 = vmul.f32 %v516, %v536
        %v550 = vmul.f32 %v517, %v536
        %v551 = vmul.f32 %v518, %v536
        %v552 = vmul.f32 %v519, %v536
        %v553 = vmul.f32 %v520, %v536
        %v554 = vmul.f32 %v521, %v536
        %v555 = vmul.f32 %v522, %v536
        %v556 = vmul.f32 %v523, %v536
        %v557 = vmul.f32 %v524, %v536
        %v558 = vmul.f32 %v525, %v536
        %v559 = vmul.f32 %v526, %v536
        %v560 = vmul.f32 %v527, %v536
        %v561 = vmul.f32 %v528, %v536
        %v562 = vmul.f32 %v529, %v536
        %v563 = vmul.f32 %v530, %v536
        %v564 = vmul.f32 %v531, %v536
        %v565 = vmul.f32 %v532, %v536
        %v566 = vmul.f32 %v533, %v536
        %v567 = vmul.f32 %v534, %v536
        %v568 = vmul.f32 %v535, %v536
        %v569 = vadd.f32 %v537, 0.0
        %v570 = vadd.f32 %v538, 0.0
        %v571 = vadd.f32 %v539, 0.0
        %v572 = vadd.f32 %v540, 0.0
        %v573 = vadd.f32 %v541, 0.0
        %v574 = vadd.f32 %v542, 0.0
        %v575 = vadd.f32 %v543, 0.0
        %v576 = vadd.f32 %v544, 0.0
        %v577 = vadd.f32 %v545, 0.0
        %v578 = vadd.f32 %v546, 0.0
        %v579 = vadd.f32 %v547, 0.0
        %v580 = vadd.f32 %v548, 0.0
        %v581 = vadd.f32 %v549, 0.0
        %v582 = vadd.f32 %v550, 0.0
        %v583 = vadd.f32 %v551, 0.0
        %v584 = vadd.f32 %v552, 0.0
        %v585 = vadd.f32 %v553, 0.0
        %v586 = vadd.f32 %v554, 0.0
        %v587 = vadd.f32 %v555, 0.0
        %v588 = vadd.f32 %v556, 0.0
        %v589 = vadd.f32 %v557, 0.0
        %v590 = vadd.f32 %v558, 0.0
        %v591 = vadd.f32 %v559, 0.0
        %v592 = vadd.f32 %v560, 0.0
        %v593 = vadd.f32 %v561, 0.0
        %v594 = vadd.f32 %v562, 0.0
        %v595 = vadd.f32 %v563, 0.0
        %v596 = vadd.f32 %v564, 0.0
        %v597 = vadd.f32 %v565, 0.0
        %v598 = vadd.f32 %v566, 0.0
        %v599 = vadd.f32 %v567, 0.0
        %v600 = vadd.f32 %v568, 0.0
        %v601 = vld [vmem:[%s503 + $0x1] sm:$0xff]
        %v602 = vld [vmem:[%s503 + $0x9] sm:$0xff]
        %v603 = vld [vmem:[%s503 + $0x19] sm:$0xff]
        %v604 = vld [vmem:[%s503 + $0x21] sm:$0xff]
        %v605 = vld [vmem:[%s503 + $0x31] sm:$0xff]
        %v606 = vld [vmem:[%s503 + $0x39] sm:$0xff]
        %v607 = vld [vmem:[%s503 + $0x49] sm:$0xff]
        %v608 = vld [vmem:[%s503 + $0x51] sm:$0xff]
        %v609 = vld [vmem:[%s503 + $0x61] sm:$0xff]
        %v610 = vld [vmem:[%s503 + $0x69] sm:$0xff]
        %v611 = vld [vmem:[%s503 + $0x79] sm:$0xff]
        %v612 = vld [vmem:[%s503 + $0x81] sm:$0xff]
        %v613 = vld [vmem:[%s503 + $0x91] sm:$0xff]
        %v614 = vld [vmem:[%s503 + $0x99] sm:$0xff]
        %v615 = vld [vmem:[%s503 + $0xa9] sm:$0xff]
        %v616 = vld [vmem:[%s503 + $0xb1] sm:$0xff]
        %v617 = vld [vmem:[%s503 + $0xc1] sm:$0xff]
        %v618 = vld [vmem:[%s503 + $0xc9] sm:$0xff]
        %v619 = vld [vmem:[%s503 + $0xd9] sm:$0xff]
        %v620 = vld [vmem:[%s503 + $0xe1] sm:$0xff]
        %v621 = vld [vmem:[%s503 + $0xf1] sm:$0xff]
        %v622 = vld [vmem:[%s503 + $0xf9] sm:$0xff]
        %v623 = vld [vmem:[%s503 + $0x109] sm:$0xff]
        %v624 = vld [vmem:[%s503 + $0x111] sm:$0xff]
        %v625 = vld [vmem:[%s503 + $0x121] sm:$0xff]
        %v626 = vld [vmem:[%s503 + $0x129] sm:$0xff]
        %v627 = vld [vmem:[%s503 + $0x139] sm:$0xff]
        %v628 = vld [vmem:[%s503 + $0x141] sm:$0xff]
        %v629 = vld [vmem:[%s503 + $0x151] sm:$0xff]
        %v630 = vld [vmem:[%s503 + $0x159] sm:$0xff]
        %v631 = vld [vmem:[%s503 + $0x169] sm:$0xff]
        %v632 = vld [vmem:[%s503 + $0x171] sm:$0xff]
        %v633 = vperm.slane %v497, 1
        %v634 = vmul.f32 %v601, %v633
        %v635 = vmul.f32 %v602, %v633
        %v636 = vmul.f32 %v603, %v633
        %v637 = vmul.f32 %v604, %v633
        %v638 = vmul.f32 %v605, %v633
        %v639 = vmul.f32 %v606, %v633
        %v640 = vmul.f32 %v607, %v633
        %v641 = vmul.f32 %v608, %v633
        %v642 = vmul.f32 %v609, %v633
        %v643 = vmul.f32 %v610, %v633
        %v644 = vmul.f32 %v611, %v633
        %v645 = vmul.f32 %v612, %v633
        %v646 = vmul.f32 %v613, %v633
        %v647 = vmul.f32 %v614, %v633
        %v648 = vmul.f32 %v615, %v633
        %v649 = vmul.f32 %v616, %v633
        %v650 = vmul.f32 %v617, %v633
        %v651 = vmul.f32 %v618, %v633
        %v652 = vmul.f32 %v619, %v633
        %v653 = vmul.f32 %v620, %v633
        %v654 = vmul.f32 %v621, %v633
        %v655 = vmul.f32 %v622, %v633
        %v656 = vmul.f32 %v623, %v633
        %v657 = vmul.f32 %v624, %v633
        %v658 = vmul.f32 %v625, %v633
        %v659 = vmul.f32 %v626, %v633
        %v660 = vmul.f32 %v627, %v633
        %v661 = vmul.f32 %v628, %v633
        %v662 = vmul.f32 %v629, %v633
        %v663 = vmul.f32 %v630, %v633
        %v664 = vmul.f32 %v631, %v633
        %v665 = vmul.f32 %v632, %v633
        %v666 = vadd.f32 %v569, %v634
        %v667 = vadd.f32 %v570, %v635
        %v668 = vadd.f32 %v571, %v636
        %v669 = vadd.f32 %v572, %v637
        %v670 = vadd.f32 %v573, %v638
        %v671 = vadd.f32 %v574, %v639
        %v672 = vadd.f32 %v575, %v640
        %v673 = vadd.f32 %v576, %v641
        %v674 = vadd.f32 %v577, %v642
        %v675 = vadd.f32 %v578, %v643
        %v676 = vadd.f32 %v579, %v644
        %v677 = vadd.f32 %v580, %v645
        %v678 = vadd.f32 %v581, %v646
        %v679 = vadd.f32 %v582, %v647
        %v680 = vadd.f32 %v583, %v648
        %v681 = vadd.f32 %v584, %v649
        %v682 = vadd.f32 %v585, %v650
        %v683 = vadd.f32 %v586, %v651
        %v684 = vadd.f32 %v587, %v652
        %v685 = vadd.f32 %v588, %v653
        %v686 = vadd.f32 %v589, %v654
        %v687 = vadd.f32 %v590, %v655
        %v688 = vadd.f32 %v591, %v656
        %v689 = vadd.f32 %v592, %v657
        %v690 = vadd.f32 %v593, %v658
        %v691 = vadd.f32 %v594, %v659
        %v692 = vadd.f32 %v595, %v660
        %v693 = vadd.f32 %v596, %v661
        %v694 = vadd.f32 %v597, %v662
        %v695 = vadd.f32 %v598, %v663
        %v696 = vadd.f32 %v599, %v664
        %v697 = vadd.f32 %v600, %v665
        %v698 = vld [vmem:[%s503 + $0x2] sm:$0xff]
        %v699 = vld [vmem:[%s503 + $0xa] sm:$0xff]
        %v700 = vld [vmem:[%s503 + $0x1a] sm:$0xff]
        %v701 = vld [vmem:[%s503 + $0x22] sm:$0xff]
        %v702 = vld [vmem:[%s503 + $0x32] sm:$0xff]
        %v703 = vld [vmem:[%s503 + $0x3a] sm:$0xff]
        %v704 = vld [vmem:[%s503 + $0x4a] sm:$0xff]
        %v705 = vld [vmem:[%s503 + $0x52] sm:$0xff]
        %v706 = vld [vmem:[%s503 + $0x62] sm:$0xff]
        %v707 = vld [vmem:[%s503 + $0x6a] sm:$0xff]
        %v708 = vld [vmem:[%s503 + $0x7a] sm:$0xff]
        %v709 = vld [vmem:[%s503 + $0x82] sm:$0xff]
        %v710 = vld [vmem:[%s503 + $0x92] sm:$0xff]
        %v711 = vld [vmem:[%s503 + $0x9a] sm:$0xff]
        %v712 = vld [vmem:[%s503 + $0xaa] sm:$0xff]
        %v713 = vld [vmem:[%s503 + $0xb2] sm:$0xff]
        %v714 = vld [vmem:[%s503 + $0xc2] sm:$0xff]
        %v715 = vld [vmem:[%s503 + $0xca] sm:$0xff]
        %v716 = vld [vmem:[%s503 + $0xda] sm:$0xff]
        %v717 = vld [vmem:[%s503 + $0xe2] sm:$0xff]
        %v718 = vld [vmem:[%s503 + $0xf2] sm:$0xff]
        %v719 = vld [vmem:[%s503 + $0xfa] sm:$0xff]
        %v720 = vld [vmem:[%s503 + $0x10a] sm:$0xff]
        %v721 = vld [vmem:[%s503 + $0x112] sm:$0xff]
        %v722 = vld [vmem:[%s503 + $0x122] sm:$0xff]
        %v723 = vld [vmem:[%s503 + $0x12a] sm:$0xff]
        %v724 = vld [vmem:[%s503 + $0x13a] sm:$0xff]
        %v725 = vld [vmem:[%s503 + $0x142] sm:$0xff]
        %v726 = vld [vmem:[%s503 + $0x152] sm:$0xff]
        %v727 = vld [vmem:[%s503 + $0x15a] sm:$0xff]
        %v728 = vld [vmem:[%s503 + $0x16a] sm:$0xff]
        %v729 = vld [vmem:[%s503 + $0x172] sm:$0xff]
        %v730 = vperm.slane %v497, 2
        %v731 = vmul.f32 %v698, %v730
        %v732 = vmul.f32 %v699, %v730
        %v733 = vmul.f32 %v700, %v730
        %v734 = vmul.f32 %v701, %v730
        %v735 = vmul.f32 %v702, %v730
        %v736 = vmul.f32 %v703, %v730
        %v737 = vmul.f32 %v704, %v730
        %v738 = vmul.f32 %v705, %v730
        %v739 = vmul.f32 %v706, %v730
        %v740 = vmul.f32 %v707, %v730
        %v741 = vmul.f32 %v708, %v730
        %v742 = vmul.f32 %v709, %v730
        %v743 = vmul.f32 %v710, %v730
        %v744 = vmul.f32 %v711, %v730
        %v745 = vmul.f32 %v712, %v730
        %v746 = vmul.f32 %v713, %v730
        %v747 = vmul.f32 %v714, %v730
        %v748 = vmul.f32 %v715, %v730
        %v749 = vmul.f32 %v716, %v730
        %v750 = vmul.f32 %v717, %v730
        %v751 = vmul.f32 %v718, %v730
        %v752 = vmul.f32 %v719, %v730
        %v753 = vmul.f32 %v720, %v730
        %v754 = vmul.f32 %v721, %v730
        %v755 = vmul.f32 %v722, %v730
        %v756 = vmul.f32 %v723, %v730
        %v757 = vmul.f32 %v724, %v730
        %v758 = vmul.f32 %v725, %v730
        %v759 = vmul.f32 %v726, %v730
        %v760 = vmul.f32 %v727, %v730
        %v761 = vmul.f32 %v728, %v730
        %v762 = vmul.f32 %v729, %v730
        %v763 = vadd.f32 %v666, %v731
        %v764 = vadd.f32 %v667, %v732
        %v765 = vadd.f32 %v668, %v733
        %v766 = vadd.f32 %v669, %v734
        %v767 = vadd.f32 %v670, %v735
        %v768 = vadd.f32 %v671, %v736
        %v769 = vadd.f32 %v672, %v737
        %v770 = vadd.f32 %v673, %v738
        %v771 = vadd.f32 %v674, %v739
        %v772 = vadd.f32 %v675, %v740
        %v773 = vadd.f32 %v676, %v741
        %v774 = vadd.f32 %v677, %v742
        %v775 = vadd.f32 %v678, %v743
        %v776 = vadd.f32 %v679, %v744
        %v777 = vadd.f32 %v680, %v745
        %v778 = vadd.f32 %v681, %v746
        %v779 = vadd.f32 %v682, %v747
        %v780 = vadd.f32 %v683, %v748
        %v781 = vadd.f32 %v684, %v749
        %v782 = vadd.f32 %v685, %v750
        %v783 = vadd.f32 %v686, %v751
        %v784 = vadd.f32 %v687, %v752
        %v785 = vadd.f32 %v688, %v753
        %v786 = vadd.f32 %v689, %v754
        %v787 = vadd.f32 %v690, %v755
        %v788 = vadd.f32 %v691, %v756
        %v789 = vadd.f32 %v692, %v757
        %v790 = vadd.f32 %v693, %v758
        %v791 = vadd.f32 %v694, %v759
        %v792 = vadd.f32 %v695, %v760
        %v793 = vadd.f32 %v696, %v761
        %v794 = vadd.f32 %v697, %v762
        %s795 = sadd.s32 24, %s502
        %s796 = scalar_lea.vmem [#allocation2], %s795
        %v797 = vld [vmem:[%s796] sm:$0xff]
        %v798 = vld [vmem:[%s796 + $0x8] sm:$0xff]
        %v799 = vld [vmem:[%s796 + $0x18] sm:$0xff]
        %v800 = vld [vmem:[%s796 + $0x20] sm:$0xff]
        %v801 = vld [vmem:[%s796 + $0x30] sm:$0xff]
        %v802 = vld [vmem:[%s796 + $0x38] sm:$0xff]
        %v803 = vld [vmem:[%s796 + $0x48] sm:$0xff]
        %v804 = vld [vmem:[%s796 + $0x50] sm:$0xff]
        %v805 = vld [vmem:[%s796 + $0x60] sm:$0xff]
        %v806 = vld [vmem:[%s796 + $0x68] sm:$0xff]
        %v807 = vld [vmem:[%s796 + $0x78] sm:$0xff]
        %v808 = vld [vmem:[%s796 + $0x80] sm:$0xff]
        %v809 = vld [vmem:[%s796 + $0x90] sm:$0xff]
        %v810 = vld [vmem:[%s796 + $0x98] sm:$0xff]
        %v811 = vld [vmem:[%s796 + $0xa8] sm:$0xff]
        %v812 = vld [vmem:[%s796 + $0xb0] sm:$0xff]
        %v813 = vld [vmem:[%s796 + $0xc0] sm:$0xff]
        %v814 = vld [vmem:[%s796 + $0xc8] sm:$0xff]
        %v815 = vld [vmem:[%s796 + $0xd8] sm:$0xff]
        %v816 = vld [vmem:[%s796 + $0xe0] sm:$0xff]
        %v817 = vld [vmem:[%s796 + $0xf0] sm:$0xff]
        %v818 = vld [vmem:[%s796 + $0xf8] sm:$0xff]
        %v819 = vld [vmem:[%s796 + $0x108] sm:$0xff]
        %v820 = vld [vmem:[%s796 + $0x110] sm:$0xff]
        %v821 = vld [vmem:[%s796 + $0x120] sm:$0xff]
        %v822 = vld [vmem:[%s796 + $0x128] sm:$0xff]
        %v823 = vld [vmem:[%s796 + $0x138] sm:$0xff]
        %v824 = vld [vmem:[%s796 + $0x140] sm:$0xff]
        %v825 = vld [vmem:[%s796 + $0x150] sm:$0xff]
        %v826 = vld [vmem:[%s796 + $0x158] sm:$0xff]
        %v827 = vld [vmem:[%s796 + $0x168] sm:$0xff]
        %v828 = vld [vmem:[%s796 + $0x170] sm:$0xff]
        %v829 = vperm.slane %v498, 0
        %v830 = vmul.f32 %v797, %v829
        %v831 = vmul.f32 %v798, %v829
        %v832 = vmul.f32 %v799, %v829
        %v833 = vmul.f32 %v800, %v829
        %v834 = vmul.f32 %v801, %v829
        %v835 = vmul.f32 %v802, %v829
        %v836 = vmul.f32 %v803, %v829
        %v837 = vmul.f32 %v804, %v829
        %v838 = vmul.f32 %v805, %v829
        %v839 = vmul.f32 %v806, %v829
        %v840 = vmul.f32 %v807, %v829
        %v841 = vmul.f32 %v808, %v829
        %v842 = vmul.f32 %v809, %v829
        %v843 = vmul.f32 %v810, %v829
        %v844 = vmul.f32 %v811, %v829
        %v845 = vmul.f32 %v812, %v829
        %v846 = vmul.f32 %v813, %v829
        %v847 = vmul.f32 %v814, %v829
        %v848 = vmul.f32 %v815, %v829
        %v849 = vmul.f32 %v816, %v829
        %v850 = vmul.f32 %v817, %v829
        %v851 = vmul.f32 %v818, %v829
        %v852 = vmul.f32 %v819, %v829
        %v853 = vmul.f32 %v820, %v829
        %v854 = vmul.f32 %v821, %v829
        %v855 = vmul.f32 %v822, %v829
        %v856 = vmul.f32 %v823, %v829
        %v857 = vmul.f32 %v824, %v829
        %v858 = vmul.f32 %v825, %v829
        %v859 = vmul.f32 %v826, %v829
        %v860 = vmul.f32 %v827, %v829
        %v861 = vmul.f32 %v828, %v829
        %v862 = vadd.f32 %v763, %v830
        %v863 = vadd.f32 %v764, %v831
        %v864 = vadd.f32 %v765, %v832
        %v865 = vadd.f32 %v766, %v833
        %v866 = vadd.f32 %v767, %v834
        %v867 = vadd.f32 %v768, %v835
        %v868 = vadd.f32 %v769, %v836
        %v869 = vadd.f32 %v770, %v837
        %v870 = vadd.f32 %v771, %v838
        %v871 = vadd.f32 %v772, %v839
        %v872 = vadd.f32 %v773, %v840
        %v873 = vadd.f32 %v774, %v841
        %v874 = vadd.f32 %v775, %v842
        %v875 = vadd.f32 %v776, %v843
        %v876 = vadd.f32 %v777, %v844
        %v877 = vadd.f32 %v778, %v845
        %v878 = vadd.f32 %v779, %v846
        %v879 = vadd.f32 %v780, %v847
        %v880 = vadd.f32 %v781, %v848
        %v881 = vadd.f32 %v782, %v849
        %v882 = vadd.f32 %v783, %v850
        %v883 = vadd.f32 %v784, %v851
        %v884 = vadd.f32 %v785, %v852
        %v885 = vadd.f32 %v786, %v853
        %v886 = vadd.f32 %v787, %v854
        %v887 = vadd.f32 %v788, %v855
        %v888 = vadd.f32 %v789, %v856
        %v889 = vadd.f32 %v790, %v857
        %v890 = vadd.f32 %v791, %v858
        %v891 = vadd.f32 %v792, %v859
        %v892 = vadd.f32 %v793, %v860
        %v893 = vadd.f32 %v794, %v861
        %v894 = vld [vmem:[%s796 + $0x1] sm:$0xff]
        %v895 = vld [vmem:[%s796 + $0x9] sm:$0xff]
        %v896 = vld [vmem:[%s796 + $0x19] sm:$0xff]
        %v897 = vld [vmem:[%s796 + $0x21] sm:$0xff]
        %v898 = vld [vmem:[%s796 + $0x31] sm:$0xff]
        %v899 = vld [vmem:[%s796 + $0x39] sm:$0xff]
        %v900 = vld [vmem:[%s796 + $0x49] sm:$0xff]
        %v901 = vld [vmem:[%s796 + $0x51] sm:$0xff]
        %v902 = vld [vmem:[%s796 + $0x61] sm:$0xff]
        %v903 = vld [vmem:[%s796 + $0x69] sm:$0xff]
        %v904 = vld [vmem:[%s796 + $0x79] sm:$0xff]
        %v905 = vld [vmem:[%s796 + $0x81] sm:$0xff]
        %v906 = vld [vmem:[%s796 + $0x91] sm:$0xff]
        %v907 = vld [vmem:[%s796 + $0x99] sm:$0xff]
        %v908 = vld [vmem:[%s796 + $0xa9] sm:$0xff]
        %v909 = vld [vmem:[%s796 + $0xb1] sm:$0xff]
        %v910 = vld [vmem:[%s796 + $0xc1] sm:$0xff]
        %v911 = vld [vmem:[%s796 + $0xc9] sm:$0xff]
        %v912 = vld [vmem:[%s796 + $0xd9] sm:$0xff]
        %v913 = vld [vmem:[%s796 + $0xe1] sm:$0xff]
        %v914 = vld [vmem:[%s796 + $0xf1] sm:$0xff]
        %v915 = vld [vmem:[%s796 + $0xf9] sm:$0xff]
        %v916 = vld [vmem:[%s796 + $0x109] sm:$0xff]
        %v917 = vld [vmem:[%s796 + $0x111] sm:$0xff]
        %v918 = vld [vmem:[%s796 + $0x121] sm:$0xff]
        %v919 = vld [vmem:[%s796 + $0x129] sm:$0xff]
        %v920 = vld [vmem:[%s796 + $0x139] sm:$0xff]
        %v921 = vld [vmem:[%s796 + $0x141] sm:$0xff]
        %v922 = vld [vmem:[%s796 + $0x151] sm:$0xff]
        %v923 = vld [vmem:[%s796 + $0x159] sm:$0xff]
        %v924 = vld [vmem:[%s796 + $0x169] sm:$0xff]
        %v925 = vld [vmem:[%s796 + $0x171] sm:$0xff]
        %v926 = vperm.slane %v498, 1
        %v927 = vmul.f32 %v894, %v926
        %v928 = vmul.f32 %v895, %v926
        %v929 = vmul.f32 %v896, %v926
        %v930 = vmul.f32 %v897, %v926
        %v931 = vmul.f32 %v898, %v926
        %v932 = vmul.f32 %v899, %v926
        %v933 = vmul.f32 %v900, %v926
        %v934 = vmul.f32 %v901, %v926
        %v935 = vmul.f32 %v902, %v926
        %v936 = vmul.f32 %v903, %v926
        %v937 = vmul.f32 %v904, %v926
        %v938 = vmul.f32 %v905, %v926
        %v939 = vmul.f32 %v906, %v926
        %v940 = vmul.f32 %v907, %v926
        %v941 = vmul.f32 %v908, %v926
        %v942 = vmul.f32 %v909, %v926
        %v943 = vmul.f32 %v910, %v926
        %v944 = vmul.f32 %v911, %v926
        %v945 = vmul.f32 %v912, %v926
        %v946 = vmul.f32 %v913, %v926
        %v947 = vmul.f32 %v914, %v926
        %v948 = vmul.f32 %v915, %v926
        %v949 = vmul.f32 %v916, %v926
        %v950 = vmul.f32 %v917, %v926
        %v951 = vmul.f32 %v918, %v926
        %v952 = vmul.f32 %v919, %v926
        %v953 = vmul.f32 %v920, %v926
        %v954 = vmul.f32 %v921, %v926
        %v955 = vmul.f32 %v922, %v926
        %v956 = vmul.f32 %v923, %v926
        %v957 = vmul.f32 %v924, %v926
        %v958 = vmul.f32 %v925, %v926
        %v959 = vadd.f32 %v862, %v927
        %v960 = vadd.f32 %v863, %v928
        %v961 = vadd.f32 %v864, %v929
        %v962 = vadd.f32 %v865, %v930
        %v963 = vadd.f32 %v866, %v931
        %v964 = vadd.f32 %v867, %v932
        %v965 = vadd.f32 %v868, %v933
        %v966 = vadd.f32 %v869, %v934
        %v967 = vadd.f32 %v870, %v935
        %v968 = vadd.f32 %v871, %v936
        %v969 = vadd.f32 %v872, %v937
        %v970 = vadd.f32 %v873, %v938
        %v971 = vadd.f32 %v874, %v939
        %v972 = vadd.f32 %v875, %v940
        %v973 = vadd.f32 %v876, %v941
        %v974 = vadd.f32 %v877, %v942
        %v975 = vadd.f32 %v878, %v943
        %v976 = vadd.f32 %v879, %v944
        %v977 = vadd.f32 %v880, %v945
        %v978 = vadd.f32 %v881, %v946
        %v979 = vadd.f32 %v882, %v947
        %v980 = vadd.f32 %v883, %v948
        %v981 = vadd.f32 %v884, %v949
        %v982 = vadd.f32 %v885, %v950
        %v983 = vadd.f32 %v886, %v951
        %v984 = vadd.f32 %v887, %v952
        %v985 = vadd.f32 %v888, %v953
        %v986 = vadd.f32 %v889, %v954
        %v987 = vadd.f32 %v890, %v955
        %v988 = vadd.f32 %v891, %v956
        %v989 = vadd.f32 %v892, %v957
        %v990 = vadd.f32 %v893, %v958
        %v991 = vld [vmem:[%s796 + $0x2] sm:$0xff]
        %v992 = vld [vmem:[%s796 + $0xa] sm:$0xff]
        %v993 = vld [vmem:[%s796 + $0x1a] sm:$0xff]
        %v994 = vld [vmem:[%s796 + $0x22] sm:$0xff]
        %v995 = vld [vmem:[%s796 + $0x32] sm:$0xff]
        %v996 = vld [vmem:[%s796 + $0x3a] sm:$0xff]
        %v997 = vld [vmem:[%s796 + $0x4a] sm:$0xff]
        %v998 = vld [vmem:[%s796 + $0x52] sm:$0xff]
        %v999 = vld [vmem:[%s796 + $0x62] sm:$0xff]
        %v1000 = vld [vmem:[%s796 + $0x6a] sm:$0xff]
        %v1001 = vld [vmem:[%s796 + $0x7a] sm:$0xff]
        %v1002 = vld [vmem:[%s796 + $0x82] sm:$0xff]
        %v1003 = vld [vmem:[%s796 + $0x92] sm:$0xff]
        %v1004 = vld [vmem:[%s796 + $0x9a] sm:$0xff]
        %v1005 = vld [vmem:[%s796 + $0xaa] sm:$0xff]
        %v1006 = vld [vmem:[%s796 + $0xb2] sm:$0xff]
        %v1007 = vld [vmem:[%s796 + $0xc2] sm:$0xff]
        %v1008 = vld [vmem:[%s796 + $0xca] sm:$0xff]
        %v1009 = vld [vmem:[%s796 + $0xda] sm:$0xff]
        %v1010 = vld [vmem:[%s796 + $0xe2] sm:$0xff]
        %v1011 = vld [vmem:[%s796 + $0xf2] sm:$0xff]
        %v1012 = vld [vmem:[%s796 + $0xfa] sm:$0xff]
        %v1013 = vld [vmem:[%s796 + $0x10a] sm:$0xff]
        %v1014 = vld [vmem:[%s796 + $0x112] sm:$0xff]
        %v1015 = vld [vmem:[%s796 + $0x122] sm:$0xff]
        %v1016 = vld [vmem:[%s796 + $0x12a] sm:$0xff]
        %v1017 = vld [vmem:[%s796 + $0x13a] sm:$0xff]
        %v1018 = vld [vmem:[%s796 + $0x142] sm:$0xff]
        %v1019 = vld [vmem:[%s796 + $0x152] sm:$0xff]
        %v1020 = vld [vmem:[%s796 + $0x15a] sm:$0xff]
        %v1021 = vld [vmem:[%s796 + $0x16a] sm:$0xff]
        %v1022 = vld [vmem:[%s796 + $0x172] sm:$0xff]
        %v1023 = vperm.slane %v498, 2
        %v1024 = vmul.f32 %v991, %v1023
        %v1025 = vmul.f32 %v992, %v1023
        %v1026 = vmul.f32 %v993, %v1023
        %v1027 = vmul.f32 %v994, %v1023
        %v1028 = vmul.f32 %v995, %v1023
        %v1029 = vmul.f32 %v996, %v1023
        %v1030 = vmul.f32 %v997, %v1023
        %v1031 = vmul.f32 %v998, %v1023
        %v1032 = vmul.f32 %v999, %v1023
        %v1033 = vmul.f32 %v1000, %v1023
        %v1034 = vmul.f32 %v1001, %v1023
        %v1035 = vmul.f32 %v1002, %v1023
        %v1036 = vmul.f32 %v1003, %v1023
        %v1037 = vmul.f32 %v1004, %v1023
        %v1038 = vmul.f32 %v1005, %v1023
        %v1039 = vmul.f32 %v1006, %v1023
        %v1040 = vmul.f32 %v1007, %v1023
        %v1041 = vmul.f32 %v1008, %v1023
        %v1042 = vmul.f32 %v1009, %v1023
        %v1043 = vmul.f32 %v1010, %v1023
        %v1044 = vmul.f32 %v1011, %v1023
        %v1045 = vmul.f32 %v1012, %v1023
        %v1046 = vmul.f32 %v1013, %v1023
        %v1047 = vmul.f32 %v1014, %v1023
        %v1048 = vmul.f32 %v1015, %v1023
        %v1049 = vmul.f32 %v1016, %v1023
        %v1050 = vmul.f32 %v1017, %v1023
        %v1051 = vmul.f32 %v1018, %v1023
        %v1052 = vmul.f32 %v1019, %v1023
        %v1053 = vmul.f32 %v1020, %v1023
        %v1054 = vmul.f32 %v1021, %v1023
        %v1055 = vmul.f32 %v1022, %v1023
        %v1056 = vadd.f32 %v959, %v1024
        %v1057 = vadd.f32 %v960, %v1025
        %v1058 = vadd.f32 %v961, %v1026
        %v1059 = vadd.f32 %v962, %v1027
        %v1060 = vadd.f32 %v963, %v1028
        %v1061 = vadd.f32 %v964, %v1029
        %v1062 = vadd.f32 %v965, %v1030
        %v1063 = vadd.f32 %v966, %v1031
        %v1064 = vadd.f32 %v967, %v1032
        %v1065 = vadd.f32 %v968, %v1033
        %v1066 = vadd.f32 %v969, %v1034
        %v1067 = vadd.f32 %v970, %v1035
        %v1068 = vadd.f32 %v971, %v1036
        %v1069 = vadd.f32 %v972, %v1037
        %v1070 = vadd.f32 %v973, %v1038
        %v1071 = vadd.f32 %v974, %v1039
        %v1072 = vadd.f32 %v975, %v1040
        %v1073 = vadd.f32 %v976, %v1041
        %v1074 = vadd.f32 %v977, %v1042
        %v1075 = vadd.f32 %v978, %v1043
        %v1076 = vadd.f32 %v979, %v1044
        %v1077 = vadd.f32 %v980, %v1045
        %v1078 = vadd.f32 %v981, %v1046
        %v1079 = vadd.f32 %v982, %v1047
        %v1080 = vadd.f32 %v983, %v1048
        %v1081 = vadd.f32 %v984, %v1049
        %v1082 = vadd.f32 %v985, %v1050
        %v1083 = vadd.f32 %v986, %v1051
        %v1084 = vadd.f32 %v987, %v1052
        %v1085 = vadd.f32 %v988, %v1053
        %v1086 = vadd.f32 %v989, %v1054
        %v1087 = vadd.f32 %v990, %v1055
        %s1088 = sadd.s32 48, %s502
        %s1089 = scalar_lea.vmem [#allocation2], %s1088
        %v1090 = vld [vmem:[%s1089] sm:$0xff]
        %v1091 = vld [vmem:[%s1089 + $0x8] sm:$0xff]
        %v1092 = vld [vmem:[%s1089 + $0x18] sm:$0xff]
        %v1093 = vld [vmem:[%s1089 + $0x20] sm:$0xff]
        %v1094 = vld [vmem:[%s1089 + $0x30] sm:$0xff]
        %v1095 = vld [vmem:[%s1089 + $0x38] sm:$0xff]
        %v1096 = vld [vmem:[%s1089 + $0x48] sm:$0xff]
        %v1097 = vld [vmem:[%s1089 + $0x50] sm:$0xff]
        %v1098 = vld [vmem:[%s1089 + $0x60] sm:$0xff]
        %v1099 = vld [vmem:[%s1089 + $0x68] sm:$0xff]
        %v1100 = vld [vmem:[%s1089 + $0x78] sm:$0xff]
        %v1101 = vld [vmem:[%s1089 + $0x80] sm:$0xff]
        %v1102 = vld [vmem:[%s1089 + $0x90] sm:$0xff]
        %v1103 = vld [vmem:[%s1089 + $0x98] sm:$0xff]
        %v1104 = vld [vmem:[%s1089 + $0xa8] sm:$0xff]
        %v1105 = vld [vmem:[%s1089 + $0xb0] sm:$0xff]
        %v1106 = vld [vmem:[%s1089 + $0xc0] sm:$0xff]
        %v1107 = vld [vmem:[%s1089 + $0xc8] sm:$0xff]
        %v1108 = vld [vmem:[%s1089 + $0xd8] sm:$0xff]
        %v1109 = vld [vmem:[%s1089 + $0xe0] sm:$0xff]
        %v1110 = vld [vmem:[%s1089 + $0xf0] sm:$0xff]
        %v1111 = vld [vmem:[%s1089 + $0xf8] sm:$0xff]
        %v1112 = vld [vmem:[%s1089 + $0x108] sm:$0xff]
        %v1113 = vld [vmem:[%s1089 + $0x110] sm:$0xff]
        %v1114 = vld [vmem:[%s1089 + $0x120] sm:$0xff]
        %v1115 = vld [vmem:[%s1089 + $0x128] sm:$0xff]
        %v1116 = vld [vmem:[%s1089 + $0x138] sm:$0xff]
        %v1117 = vld [vmem:[%s1089 + $0x140] sm:$0xff]
        %v1118 = vld [vmem:[%s1089 + $0x150] sm:$0xff]
        %v1119 = vld [vmem:[%s1089 + $0x158] sm:$0xff]
        %v1120 = vld [vmem:[%s1089 + $0x168] sm:$0xff]
        %v1121 = vld [vmem:[%s1089 + $0x170] sm:$0xff]
        %v1122 = vperm.slane %v499, 0
        %v1123 = vmul.f32 %v1090, %v1122
        %v1124 = vmul.f32 %v1091, %v1122
        %v1125 = vmul.f32 %v1092, %v1122
        %v1126 = vmul.f32 %v1093, %v1122
        %v1127 = vmul.f32 %v1094, %v1122
        %v1128 = vmul.f32 %v1095, %v1122
        %v1129 = vmul.f32 %v1096, %v1122
        %v1130 = vmul.f32 %v1097, %v1122
        %v1131 = vmul.f32 %v1098, %v1122
        %v1132 = vmul.f32 %v1099, %v1122
        %v1133 = vmul.f32 %v1100, %v1122
        %v1134 = vmul.f32 %v1101, %v1122
        %v1135 = vmul.f32 %v1102, %v1122
        %v1136 = vmul.f32 %v1103, %v1122
        %v1137 = vmul.f32 %v1104, %v1122
        %v1138 = vmul.f32 %v1105, %v1122
        %v1139 = vmul.f32 %v1106, %v1122
        %v1140 = vmul.f32 %v1107, %v1122
        %v1141 = vmul.f32 %v1108, %v1122
        %v1142 = vmul.f32 %v1109, %v1122
        %v1143 = vmul.f32 %v1110, %v1122
        %v1144 = vmul.f32 %v1111, %v1122
        %v1145 = vmul.f32 %v1112, %v1122
        %v1146 = vmul.f32 %v1113, %v1122
        %v1147 = vmul.f32 %v1114, %v1122
        %v1148 = vmul.f32 %v1115, %v1122
        %v1149 = vmul.f32 %v1116, %v1122
        %v1150 = vmul.f32 %v1117, %v1122
        %v1151 = vmul.f32 %v1118, %v1122
        %v1152 = vmul.f32 %v1119, %v1122
        %v1153 = vmul.f32 %v1120, %v1122
        %v1154 = vmul.f32 %v1121, %v1122
        %v1155 = vadd.f32 %v1056, %v1123
        %v1156 = vadd.f32 %v1057, %v1124
        %v1157 = vadd.f32 %v1058, %v1125
        %v1158 = vadd.f32 %v1059, %v1126
        %v1159 = vadd.f32 %v1060, %v1127
        %v1160 = vadd.f32 %v1061, %v1128
        %v1161 = vadd.f32 %v1062, %v1129
        %v1162 = vadd.f32 %v1063, %v1130
        %v1163 = vadd.f32 %v1064, %v1131
        %v1164 = vadd.f32 %v1065, %v1132
        %v1165 = vadd.f32 %v1066, %v1133
        %v1166 = vadd.f32 %v1067, %v1134
        %v1167 = vadd.f32 %v1068, %v1135
        %v1168 = vadd.f32 %v1069, %v1136
        %v1169 = vadd.f32 %v1070, %v1137
        %v1170 = vadd.f32 %v1071, %v1138
        %v1171 = vadd.f32 %v1072, %v1139
        %v1172 = vadd.f32 %v1073, %v1140
        %v1173 = vadd.f32 %v1074, %v1141
        %v1174 = vadd.f32 %v1075, %v1142
        %v1175 = vadd.f32 %v1076, %v1143
        %v1176 = vadd.f32 %v1077, %v1144
        %v1177 = vadd.f32 %v1078, %v1145
        %v1178 = vadd.f32 %v1079, %v1146
        %v1179 = vadd.f32 %v1080, %v1147
        %v1180 = vadd.f32 %v1081, %v1148
        %v1181 = vadd.f32 %v1082, %v1149
        %v1182 = vadd.f32 %v1083, %v1150
        %v1183 = vadd.f32 %v1084, %v1151
        %v1184 = vadd.f32 %v1085, %v1152
        %v1185 = vadd.f32 %v1086, %v1153
        %v1186 = vadd.f32 %v1087, %v1154
        %v1187 = vld [vmem:[%s1089 + $0x1] sm:$0xff]
        %v1188 = vld [vmem:[%s1089 + $0x9] sm:$0xff]
        %v1189 = vld [vmem:[%s1089 + $0x19] sm:$0xff]
        %v1190 = vld [vmem:[%s1089 + $0x21] sm:$0xff]
        %v1191 = vld [vmem:[%s1089 + $0x31] sm:$0xff]
        %v1192 = vld [vmem:[%s1089 + $0x39] sm:$0xff]
        %v1193 = vld [vmem:[%s1089 + $0x49] sm:$0xff]
        %v1194 = vld [vmem:[%s1089 + $0x51] sm:$0xff]
        %v1195 = vld [vmem:[%s1089 + $0x61] sm:$0xff]
        %v1196 = vld [vmem:[%s1089 + $0x69] sm:$0xff]
        %v1197 = vld [vmem:[%s1089 + $0x79] sm:$0xff]
        %v1198 = vld [vmem:[%s1089 + $0x81] sm:$0xff]
        %v1199 = vld [vmem:[%s1089 + $0x91] sm:$0xff]
        %v1200 = vld [vmem:[%s1089 + $0x99] sm:$0xff]
        %v1201 = vld [vmem:[%s1089 + $0xa9] sm:$0xff]
        %v1202 = vld [vmem:[%s1089 + $0xb1] sm:$0xff]
        %v1203 = vld [vmem:[%s1089 + $0xc1] sm:$0xff]
        %v1204 = vld [vmem:[%s1089 + $0xc9] sm:$0xff]
        %v1205 = vld [vmem:[%s1089 + $0xd9] sm:$0xff]
        %v1206 = vld [vmem:[%s1089 + $0xe1] sm:$0xff]
        %v1207 = vld [vmem:[%s1089 + $0xf1] sm:$0xff]
        %v1208 = vld [vmem:[%s1089 + $0xf9] sm:$0xff]
        %v1209 = vld [vmem:[%s1089 + $0x109] sm:$0xff]
        %v1210 = vld [vmem:[%s1089 + $0x111] sm:$0xff]
        %v1211 = vld [vmem:[%s1089 + $0x121] sm:$0xff]
        %v1212 = vld [vmem:[%s1089 + $0x129] sm:$0xff]
        %v1213 = vld [vmem:[%s1089 + $0x139] sm:$0xff]
        %v1214 = vld [vmem:[%s1089 + $0x141] sm:$0xff]
        %v1215 = vld [vmem:[%s1089 + $0x151] sm:$0xff]
        %v1216 = vld [vmem:[%s1089 + $0x159] sm:$0xff]
        %v1217 = vld [vmem:[%s1089 + $0x169] sm:$0xff]
        %v1218 = vld [vmem:[%s1089 + $0x171] sm:$0xff]
        %v1219 = vperm.slane %v499, 1
        %v1220 = vmul.f32 %v1187, %v1219
        %v1221 = vmul.f32 %v1188, %v1219
        %v1222 = vmul.f32 %v1189, %v1219
        %v1223 = vmul.f32 %v1190, %v1219
        %v1224 = vmul.f32 %v1191, %v1219
        %v1225 = vmul.f32 %v1192, %v1219
        %v1226 = vmul.f32 %v1193, %v1219
        %v1227 = vmul.f32 %v1194, %v1219
        %v1228 = vmul.f32 %v1195, %v1219
        %v1229 = vmul.f32 %v1196, %v1219
        %v1230 = vmul.f32 %v1197, %v1219
        %v1231 = vmul.f32 %v1198, %v1219
        %v1232 = vmul.f32 %v1199, %v1219
        %v1233 = vmul.f32 %v1200, %v1219
        %v1234 = vmul.f32 %v1201, %v1219
        %v1235 = vmul.f32 %v1202, %v1219
        %v1236 = vmul.f32 %v1203, %v1219
        %v1237 = vmul.f32 %v1204, %v1219
        %v1238 = vmul.f32 %v1205, %v1219
        %v1239 = vmul.f32 %v1206, %v1219
        %v1240 = vmul.f32 %v1207, %v1219
        %v1241 = vmul.f32 %v1208, %v1219
        %v1242 = vmul.f32 %v1209, %v1219
        %v1243 = vmul.f32 %v1210, %v1219
        %v1244 = vmul.f32 %v1211, %v1219
        %v1245 = vmul.f32 %v1212, %v1219
        %v1246 = vmul.f32 %v1213, %v1219
        %v1247 = vmul.f32 %v1214, %v1219
        %v1248 = vmul.f32 %v1215, %v1219
        %v1249 = vmul.f32 %v1216, %v1219
        %v1250 = vmul.f32 %v1217, %v1219
        %v1251 = vmul.f32 %v1218, %v1219
        %v1252 = vadd.f32 %v1155, %v1220
        %v1253 = vadd.f32 %v1156, %v1221
        %v1254 = vadd.f32 %v1157, %v1222
        %v1255 = vadd.f32 %v1158, %v1223
        %v1256 = vadd.f32 %v1159, %v1224
        %v1257 = vadd.f32 %v1160, %v1225
        %v1258 = vadd.f32 %v1161, %v1226
        %v1259 = vadd.f32 %v1162, %v1227
        %v1260 = vadd.f32 %v1163, %v1228
        %v1261 = vadd.f32 %v1164, %v1229
        %v1262 = vadd.f32 %v1165, %v1230
        %v1263 = vadd.f32 %v1166, %v1231
        %v1264 = vadd.f32 %v1167, %v1232
        %v1265 = vadd.f32 %v1168, %v1233
        %v1266 = vadd.f32 %v1169, %v1234
        %v1267 = vadd.f32 %v1170, %v1235
        %v1268 = vadd.f32 %v1171, %v1236
        %v1269 = vadd.f32 %v1172, %v1237
        %v1270 = vadd.f32 %v1173, %v1238
        %v1271 = vadd.f32 %v1174, %v1239
        %v1272 = vadd.f32 %v1175, %v1240
        %v1273 = vadd.f32 %v1176, %v1241
        %v1274 = vadd.f32 %v1177, %v1242
        %v1275 = vadd.f32 %v1178, %v1243
        %v1276 = vadd.f32 %v1179, %v1244
        %v1277 = vadd.f32 %v1180, %v1245
        %v1278 = vadd.f32 %v1181, %v1246
        %v1279 = vadd.f32 %v1182, %v1247
        %v1280 = vadd.f32 %v1183, %v1248
        %v1281 = vadd.f32 %v1184, %v1249
        %v1282 = vadd.f32 %v1185, %v1250
        %v1283 = vadd.f32 %v1186, %v1251
        %v1284 = vld [vmem:[%s1089 + $0x2] sm:$0xff]
        %v1285 = vld [vmem:[%s1089 + $0xa] sm:$0xff]
        %v1286 = vld [vmem:[%s1089 + $0x1a] sm:$0xff]
        %v1287 = vld [vmem:[%s1089 + $0x22] sm:$0xff]
        %v1288 = vld [vmem:[%s1089 + $0x32] sm:$0xff]
        %v1289 = vld [vmem:[%s1089 + $0x3a] sm:$0xff]
        %v1290 = vld [vmem:[%s1089 + $0x4a] sm:$0xff]
        %v1291 = vld [vmem:[%s1089 + $0x52] sm:$0xff]
        %v1292 = vld [vmem:[%s1089 + $0x62] sm:$0xff]
        %v1293 = vld [vmem:[%s1089 + $0x6a] sm:$0xff]
        %v1294 = vld [vmem:[%s1089 + $0x7a] sm:$0xff]
        %v1295 = vld [vmem:[%s1089 + $0x82] sm:$0xff]
        %v1296 = vld [vmem:[%s1089 + $0x92] sm:$0xff]
        %v1297 = vld [vmem:[%s1089 + $0x9a] sm:$0xff]
        %v1298 = vld [vmem:[%s1089 + $0xaa] sm:$0xff]
        %v1299 = vld [vmem:[%s1089 + $0xb2] sm:$0xff]
        %v1300 = vld [vmem:[%s1089 + $0xc2] sm:$0xff]
        %v1301 = vld [vmem:[%s1089 + $0xca] sm:$0xff]
        %v1302 = vld [vmem:[%s1089 + $0xda] sm:$0xff]
        %v1303 = vld [vmem:[%s1089 + $0xe2] sm:$0xff]
        %v1304 = vld [vmem:[%s1089 + $0xf2] sm:$0xff]
        %v1305 = vld [vmem:[%s1089 + $0xfa] sm:$0xff]
        %v1306 = vld [vmem:[%s1089 + $0x10a] sm:$0xff]
        %v1307 = vld [vmem:[%s1089 + $0x112] sm:$0xff]
        %v1308 = vld [vmem:[%s1089 + $0x122] sm:$0xff]
        %v1309 = vld [vmem:[%s1089 + $0x12a] sm:$0xff]
        %v1310 = vld [vmem:[%s1089 + $0x13a] sm:$0xff]
        %v1311 = vld [vmem:[%s1089 + $0x142] sm:$0xff]
        %v1312 = vld [vmem:[%s1089 + $0x152] sm:$0xff]
        %v1313 = vld [vmem:[%s1089 + $0x15a] sm:$0xff]
        %v1314 = vld [vmem:[%s1089 + $0x16a] sm:$0xff]
        %v1315 = vld [vmem:[%s1089 + $0x172] sm:$0xff]
        %v1316 = vperm.slane %v499, 2
        %v1317 = vmul.f32 %v1284, %v1316
        %v1318 = vmul.f32 %v1285, %v1316
        %v1319 = vmul.f32 %v1286, %v1316
        %v1320 = vmul.f32 %v1287, %v1316
        %v1321 = vmul.f32 %v1288, %v1316
        %v1322 = vmul.f32 %v1289, %v1316
        %v1323 = vmul.f32 %v1290, %v1316
        %v1324 = vmul.f32 %v1291, %v1316
        %v1325 = vmul.f32 %v1292, %v1316
        %v1326 = vmul.f32 %v1293, %v1316
        %v1327 = vmul.f32 %v1294, %v1316
        %v1328 = vmul.f32 %v1295, %v1316
        %v1329 = vmul.f32 %v1296, %v1316
        %v1330 = vmul.f32 %v1297, %v1316
        %v1331 = vmul.f32 %v1298, %v1316
        %v1332 = vmul.f32 %v1299, %v1316
        %v1333 = vmul.f32 %v1300, %v1316
        %v1334 = vmul.f32 %v1301, %v1316
        %v1335 = vmul.f32 %v1302, %v1316
        %v1336 = vmul.f32 %v1303, %v1316
        %v1337 = vmul.f32 %v1304, %v1316
        %v1338 = vmul.f32 %v1305, %v1316
        %v1339 = vmul.f32 %v1306, %v1316
        %v1340 = vmul.f32 %v1307, %v1316
        %v1341 = vmul.f32 %v1308, %v1316
        %v1342 = vmul.f32 %v1309, %v1316
        %v1343 = vmul.f32 %v1310, %v1316
        %v1344 = vmul.f32 %v1311, %v1316
        %v1345 = vmul.f32 %v1312, %v1316
        %v1346 = vmul.f32 %v1313, %v1316
        %v1347 = vmul.f32 %v1314, %v1316
        %v1348 = vmul.f32 %v1315, %v1316
        %v1349 = vadd.f32 %v1252, %v1317
        %v1350 = vadd.f32 %v1253, %v1318
        %v1351 = vadd.f32 %v1254, %v1319
        %v1352 = vadd.f32 %v1255, %v1320
        %v1353 = vadd.f32 %v1256, %v1321
        %v1354 = vadd.f32 %v1257, %v1322
        %v1355 = vadd.f32 %v1258, %v1323
        %v1356 = vadd.f32 %v1259, %v1324
        %v1357 = vadd.f32 %v1260, %v1325
        %v1358 = vadd.f32 %v1261, %v1326
        %v1359 = vadd.f32 %v1262, %v1327
        %v1360 = vadd.f32 %v1263, %v1328
        %v1361 = vadd.f32 %v1264, %v1329
        %v1362 = vadd.f32 %v1265, %v1330
        %v1363 = vadd.f32 %v1266, %v1331
        %v1364 = vadd.f32 %v1267, %v1332
        %v1365 = vadd.f32 %v1268, %v1333
        %v1366 = vadd.f32 %v1269, %v1334
        %v1367 = vadd.f32 %v1270, %v1335
        %v1368 = vadd.f32 %v1271, %v1336
        %v1369 = vadd.f32 %v1272, %v1337
        %v1370 = vadd.f32 %v1273, %v1338
        %v1371 = vadd.f32 %v1274, %v1339
        %v1372 = vadd.f32 %v1275, %v1340
        %v1373 = vadd.f32 %v1276, %v1341
        %v1374 = vadd.f32 %v1277, %v1342
        %v1375 = vadd.f32 %v1278, %v1343
        %v1376 = vadd.f32 %v1279, %v1344
        %v1377 = vadd.f32 %v1280, %v1345
        %v1378 = vadd.f32 %v1281, %v1346
        %v1379 = vadd.f32 %v1282, %v1347
        %v1380 = vadd.f32 %v1283, %v1348
        %v1382 = vperm.slane %v500, 0
        %v1384 = vadd.f32 %v1349, %v1382
        %v1385 = vadd.f32 %v1350, %v1382
        %v1386 = vadd.f32 %v1351, %v1382
        %v1387 = vadd.f32 %v1352, %v1382
        %v1388 = vadd.f32 %v1353, %v1382
        %v1389 = vadd.f32 %v1354, %v1382
        %v1390 = vadd.f32 %v1355, %v1382
        %v1391 = vadd.f32 %v1356, %v1382
        %v1392 = vadd.f32 %v1357, %v1382
        %v1393 = vadd.f32 %v1358, %v1382
        %v1394 = vadd.f32 %v1359, %v1382
        %v1395 = vadd.f32 %v1360, %v1382
        %v1396 = vadd.f32 %v1361, %v1382
        %v1397 = vadd.f32 %v1362, %v1382
        %v1398 = vadd.f32 %v1363, %v1382
        %v1399 = vadd.f32 %v1364, %v1382
        %v1400 = vadd.f32 %v1365, %v1382
        %v1401 = vadd.f32 %v1366, %v1382
        %v1402 = vadd.f32 %v1367, %v1382
        %v1403 = vadd.f32 %v1368, %v1382
        %v1404 = vadd.f32 %v1369, %v1382
        %v1405 = vadd.f32 %v1370, %v1382
        %v1406 = vadd.f32 %v1371, %v1382
        %v1407 = vadd.f32 %v1372, %v1382
        %v1408 = vadd.f32 %v1373, %v1382
        %v1409 = vadd.f32 %v1374, %v1382
        %v1410 = vadd.f32 %v1375, %v1382
        %v1411 = vadd.f32 %v1376, %v1382
        %v1412 = vadd.f32 %v1377, %v1382
        %v1413 = vadd.f32 %v1378, %v1382
        %v1414 = vadd.f32 %v1379, %v1382
        %v1415 = vadd.f32 %v1380, %v1382
        %v1416 = vmax.f32 %v1384, 0.0
        %v1417 = vmax.f32 %v1385, 0.0
        %v1418 = vmax.f32 %v1386, 0.0
        %v1419 = vmax.f32 %v1387, 0.0
        %v1420 = vmax.f32 %v1388, 0.0
        %v1421 = vmax.f32 %v1389, 0.0
        %v1422 = vmax.f32 %v1390, 0.0
        %v1423 = vmax.f32 %v1391, 0.0
        %v1424 = vmax.f32 %v1392, 0.0
        %v1425 = vmax.f32 %v1393, 0.0
        %v1426 = vmax.f32 %v1394, 0.0
        %v1427 = vmax.f32 %v1395, 0.0
        %v1428 = vmax.f32 %v1396, 0.0
        %v1429 = vmax.f32 %v1397, 0.0
        %v1430 = vmax.f32 %v1398, 0.0
        %v1431 = vmax.f32 %v1399, 0.0
        %v1432 = vmax.f32 %v1400, 0.0
        %v1433 = vmax.f32 %v1401, 0.0
        %v1434 = vmax.f32 %v1402, 0.0
        %v1435 = vmax.f32 %v1403, 0.0
        %v1436 = vmax.f32 %v1404, 0.0
        %v1437 = vmax.f32 %v1405, 0.0
        %v1438 = vmax.f32 %v1406, 0.0
        %v1439 = vmax.f32 %v1407, 0.0
        %v1440 = vmax.f32 %v1408, 0.0
        %v1441 = vmax.f32 %v1409, 0.0
        %v1442 = vmax.f32 %v1410, 0.0
        %v1443 = vmax.f32 %v1411, 0.0
        %v1444 = vmax.f32 %v1412, 0.0
        %v1445 = vmax.f32 %v1413, 0.0
        %v1446 = vmax.f32 %v1414, 0.0
        %v1447 = vmax.f32 %v1415, 0.0
        %v1448 = vld [vmem:[%s3] sm:$0xff]
        %v1449 = vld [vmem:[%s3 + $0x8] sm:$0xff]
        %v1450 = vld [vmem:[%s3 + $0x10] sm:$0xff]
        %v1451 = vld [vmem:[%s3 + $0x18] sm:$0xff]
        %v1452 = vld [vmem:[%s3 + $0x20] sm:$0xff]
        %v1453 = vld [vmem:[%s3 + $0x28] sm:$0xff]
        %v1454 = vld [vmem:[%s3 + $0x30] sm:$0xff]
        %v1455 = vld [vmem:[%s3 + $0x38] sm:$0xff]
        %v1456 = vld [vmem:[%s3 + $0x40] sm:$0xff]
        %v1457 = vld [vmem:[%s3 + $0x48] sm:$0xff]
        %v1458 = vld [vmem:[%s3 + $0x50] sm:$0xff]
        %v1459 = vld [vmem:[%s3 + $0x58] sm:$0xff]
        %v1460 = vld [vmem:[%s3 + $0x60] sm:$0xff]
        %v1461 = vld [vmem:[%s3 + $0x68] sm:$0xff]
        %v1462 = vld [vmem:[%s3 + $0x70] sm:$0xff]
        %v1463 = vld [vmem:[%s3 + $0x78] sm:$0xff]
        %v1465 = vperm.slane %v501, 0
        %1467 = vmatpush.msra.mxu0 %v1463
        %1468 = vmatpush.msra.mxu0 %v1462
        %1469 = vmatpush.msra.mxu0 %v1461
        %1470 = vmatpush.msra.mxu0 %v1460
        %1471 = vmatpush.msra.mxu0 %v1459
        %1472 = vmatpush.msra.mxu0 %v1458
        %1473 = vmatpush.msra.mxu0 %v1457
        %1474 = vmatpush.msra.mxu0 %v1456
        %1475 = vmatpush.msra.mxu0 %v1455
        %1476 = vmatpush.msra.mxu0 %v1454
        %1477 = vmatpush.msra.mxu0 %v1453
        %1478 = vmatpush.msra.mxu0 %v1452
        %1479 = vmatpush.msra.mxu0 %v1451
        %1480 = vmatpush.msra.mxu0 %v1450
        %1481 = vmatpush.msra.mxu0 %v1449
        %1482 = vmatpush.msra.mxu0 %v1448
        %1483 = vmatmul.f32.gmra.mxu0 %v1416
        %v1484 = vpop.f32.mrf.mxu0
        %v1485 = vadd.f32 %v1465, %v1484
        %1486 = vmatmul.f32.gmra.mxu0 %v1417
        %v1487 = vpop.f32.mrf.mxu0
        %v1488 = vadd.f32 %v1465, %v1487
        %1489 = vmatmul.f32.gmra.mxu0 %v1418
        %v1490 = vpop.f32.mrf.mxu0
        %v1491 = vadd.f32 %v1465, %v1490
        %1492 = vmatmul.f32.gmra.mxu0 %v1419
        %v1493 = vpop.f32.mrf.mxu0
        %v1494 = vadd.f32 %v1465, %v1493
        %1495 = vmatmul.f32.gmra.mxu0 %v1420
        %v1496 = vpop.f32.mrf.mxu0
        %v1497 = vadd.f32 %v1465, %v1496
        %1498 = vmatmul.f32.gmra.mxu0 %v1421
        %v1499 = vpop.f32.mrf.mxu0
        %v1500 = vadd.f32 %v1465, %v1499
        %1501 = vmatmul.f32.gmra.mxu0 %v1422
        %v1502 = vpop.f32.mrf.mxu0
        %v1503 = vadd.f32 %v1465, %v1502
        %1504 = vmatmul.f32.gmra.mxu0 %v1423
        %v1505 = vpop.f32.mrf.mxu0
        %v1506 = vadd.f32 %v1465, %v1505
        %1507 = vmatmul.f32.gmra.mxu0 %v1424
        %v1508 = vpop.f32.mrf.mxu0
        %v1509 = vadd.f32 %v1465, %v1508
        %1510 = vmatmul.f32.gmra.mxu0 %v1425
        %v1511 = vpop.f32.mrf.mxu0
        %v1512 = vadd.f32 %v1465, %v1511
        %1513 = vmatmul.f32.gmra.mxu0 %v1426
        %v1514 = vpop.f32.mrf.mxu0
        %v1515 = vadd.f32 %v1465, %v1514
        %1516 = vmatmul.f32.gmra.mxu0 %v1427
        %v1517 = vpop.f32.mrf.mxu0
        %v1518 = vadd.f32 %v1465, %v1517
        %1519 = vmatmul.f32.gmra.mxu0 %v1428
        %v1520 = vpop.f32.mrf.mxu0
        %v1521 = vadd.f32 %v1465, %v1520
        %1522 = vmatmul.f32.gmra.mxu0 %v1429
        %v1523 = vpop.f32.mrf.mxu0
        %v1524 = vadd.f32 %v1465, %v1523
        %1525 = vmatmul.f32.gmra.mxu0 %v1430
        %v1526 = vpop.f32.mrf.mxu0
        %v1527 = vadd.f32 %v1465, %v1526
        %1528 = vmatmul.f32.gmra.mxu0 %v1431
        %v1529 = vpop.f32.mrf.mxu0
        %v1530 = vadd.f32 %v1465, %v1529
        %1531 = vmatmul.f32.gmra.mxu0 %v1432
        %v1532 = vpop.f32.mrf.mxu0
        %v1533 = vadd.f32 %v1465, %v1532
        %1534 = vmatmul.f32.gmra.mxu0 %v1433
        %v1535 = vpop.f32.mrf.mxu0
        %v1536 = vadd.f32 %v1465, %v1535
        %1537 = vmatmul.f32.gmra.mxu0 %v1434
        %v1538 = vpop.f32.mrf.mxu0
        %v1539 = vadd.f32 %v1465, %v1538
        %1540 = vmatmul.f32.gmra.mxu0 %v1435
        %v1541 = vpop.f32.mrf.mxu0
        %v1542 = vadd.f32 %v1465, %v1541
        %1543 = vmatmul.f32.gmra.mxu0 %v1436
        %v1544 = vpop.f32.mrf.mxu0
        %v1545 = vadd.f32 %v1465, %v1544
        %1546 = vmatmul.f32.gmra.mxu0 %v1437
        %v1547 = vpop.f32.mrf.mxu0
        %v1548 = vadd.f32 %v1465, %v1547
        %1549 = vmatmul.f32.gmra.mxu0 %v1438
        %v1550 = vpop.f32.mrf.mxu0
        %v1551 = vadd.f32 %v1465, %v1550
        %1552 = vmatmul.f32.gmra.mxu0 %v1439
        %v1553 = vpop.f32.mrf.mxu0
        %v1554 = vadd.f32 %v1465, %v1553
        %1555 = vmatmul.f32.gmra.mxu0 %v1440
        %v1556 = vpop.f32.mrf.mxu0
        %v1557 = vadd.f32 %v1465, %v1556
        %1558 = vmatmul.f32.gmra.mxu0 %v1441
        %v1559 = vpop.f32.mrf.mxu0
        %v1560 = vadd.f32 %v1465, %v1559
        %1561 = vmatmul.f32.gmra.mxu0 %v1442
        %v1562 = vpop.f32.mrf.mxu0
        %v1563 = vadd.f32 %v1465, %v1562
        %1564 = vmatmul.f32.gmra.mxu0 %v1443
        %v1565 = vpop.f32.mrf.mxu0
        %v1566 = vadd.f32 %v1465, %v1565
        %1567 = vmatmul.f32.gmra.mxu0 %v1444
        %v1568 = vpop.f32.mrf.mxu0
        %v1569 = vadd.f32 %v1465, %v1568
        %1570 = vmatmul.f32.gmra.mxu0 %v1445
        %v1571 = vpop.f32.mrf.mxu0
        %v1572 = vadd.f32 %v1465, %v1571
        %1573 = vmatmul.f32.gmra.mxu0 %v1446
        %v1574 = vpop.f32.mrf.mxu0
        %v1575 = vadd.f32 %v1465, %v1574
        %1576 = vmatmul.f32.gmra.mxu0 %v1447
        %v1577 = vpop.f32.mrf.mxu0
        %v1578 = vadd.f32 %v1465, %v1577
        %1579 = vdwg.mxu0
        %v1580 = vmax.f32 %v1485, 0.0
        %v1581 = vmax.f32 %v1488, 0.0
        %v1582 = vmax.f32 %v1491, 0.0
        %v1583 = vmax.f32 %v1494, 0.0
        %v1584 = vmax.f32 %v1497, 0.0
        %v1585 = vmax.f32 %v1500, 0.0
        %v1586 = vmax.f32 %v1503, 0.0
        %v1587 = vmax.f32 %v1506, 0.0
        %v1588 = vmax.f32 %v1509, 0.0
        %v1589 = vmax.f32 %v1512, 0.0
        %v1590 = vmax.f32 %v1515, 0.0
        %v1591 = vmax.f32 %v1518, 0.0
        %v1592 = vmax.f32 %v1521, 0.0
        %v1593 = vmax.f32 %v1524, 0.0
        %v1594 = vmax.f32 %v1527, 0.0
        %v1595 = vmax.f32 %v1530, 0.0
        %v1596 = vmax.f32 %v1533, 0.0
        %v1597 = vmax.f32 %v1536, 0.0
        %v1598 = vmax.f32 %v1539, 0.0
        %v1599 = vmax.f32 %v1542, 0.0
        %v1600 = vmax.f32 %v1545, 0.0
        %v1601 = vmax.f32 %v1548, 0.0
        %v1602 = vmax.f32 %v1551, 0.0
        %v1603 = vmax.f32 %v1554, 0.0
        %v1604 = vmax.f32 %v1557, 0.0
        %v1605 = vmax.f32 %v1560, 0.0
        %v1606 = vmax.f32 %v1563, 0.0
        %v1607 = vmax.f32 %v1566, 0.0
        %v1608 = vmax.f32 %v1569, 0.0
        %v1609 = vmax.f32 %v1572, 0.0
        %v1610 = vmax.f32 %v1575, 0.0
        %v1611 = vmax.f32 %v1578, 0.0
        %1612 = vst [vmem:[%s190] sm:$0xff] %v1580
        %1613 = vst [vmem:[%s190 + $0x8] sm:$0xff] %v1581
        %1614 = vst [vmem:[%s190 + $0x10] sm:$0xff] %v1582
        %1615 = vst [vmem:[%s190 + $0x18] sm:$0xff] %v1583
        %1616 = vst [vmem:[%s190 + $0x20] sm:$0xff] %v1584
        %1617 = vst [vmem:[%s190 + $0x28] sm:$0xff] %v1585
        %1618 = vst [vmem:[%s190 + $0x30] sm:$0xff] %v1586
        %1619 = vst [vmem:[%s190 + $0x38] sm:$0xff] %v1587
        %1620 = vst [vmem:[%s190 + $0x40] sm:$0xff] %v1588
        %1621 = vst [vmem:[%s190 + $0x48] sm:$0xff] %v1589
        %1622 = vst [vmem:[%s190 + $0x50] sm:$0xff] %v1590
        %1623 = vst [vmem:[%s190 + $0x58] sm:$0xff] %v1591
        %1624 = vst [vmem:[%s190 + $0x60] sm:$0xff] %v1592
        %1625 = vst [vmem:[%s190 + $0x68] sm:$0xff] %v1593
        %1626 = vst [vmem:[%s190 + $0x70] sm:$0xff] %v1594
        %1627 = vst [vmem:[%s190 + $0x78] sm:$0xff] %v1595
        %1628 = vst [vmem:[%s190 + $0x80] sm:$0xff] %v1596
        %1629 = vst [vmem:[%s190 + $0x88] sm:$0xff] %v1597
        %1630 = vst [vmem:[%s190 + $0x90] sm:$0xff] %v1598
        %1631 = vst [vmem:[%s190 + $0x98] sm:$0xff] %v1599
        %1632 = vst [vmem:[%s190 + $0xa0] sm:$0xff] %v1600
        %1633 = vst [vmem:[%s190 + $0xa8] sm:$0xff] %v1601
        %1634 = vst [vmem:[%s190 + $0xb0] sm:$0xff] %v1602
        %1635 = vst [vmem:[%s190 + $0xb8] sm:$0xff] %v1603
        %1636 = vst [vmem:[%s190 + $0xc0] sm:$0xff] %v1604
        %1637 = vst [vmem:[%s190 + $0xc8] sm:$0xff] %v1605
        %1638 = vst [vmem:[%s190 + $0xd0] sm:$0xff] %v1606
        %1639 = vst [vmem:[%s190 + $0xd8] sm:$0xff] %v1607
        %1640 = vst [vmem:[%s190 + $0xe0] sm:$0xff] %v1608
        %1641 = vst [vmem:[%s190 + $0xe8] sm:$0xff] %v1609
        %1642 = vst [vmem:[%s190 + $0xf0] sm:$0xff] %v1610
        %1643 = vst [vmem:[%s190 + $0xf8] sm:$0xff] %v1611
        %s1644 = sand.u32 %s125, 1
        %s1645 = scalar_lea.sflag [#allocation5], %s1644
        %s1646 = sand.u32 %s125, 1
        %s1647 = smul.addr %s1646, 256
        %s1648 = scalar_lea.vmem [#allocation4], %s1647
        // Predicated region
        $region89: #{tpu_custom_call.1} parent=35 // pred_check
          %p1649 = pneg %p135
        $region90: #{tpu_custom_call.1} parent=35 // pred_check_branch
          %1651 = sbr.rel (%p1649) target = $region92
        $region91: #{tpu_custom_call.1} parent=35 // pred_region
          %s1652 = smul.u32 16, %s24
          %1654 = vsyncadd %s1645, 0
          %s1655 = smul.addr %s1652, 2
          %s1656 = smul.addr %s23, 32
          %s1657 = sadd.s32 %s1655, %s1656
          %s1658 = smul.addr %s1657, 8
          %s1659 = scalar_lea.hbm %s5, %s1658
          %s1660 = sshll.u32 %s1648, 4
          %s1661 = int_to_ptr.vmem [resolvable:$true] %s1660
          %s1662 = sshll.u32 %s1659, 4
          %s1663 = int_to_ptr.hbm [resolvable:$true] %s1662
          %1668 = dma.vmem_to_hbm [thread:$0]  %s1661, 4096, %s1663, %s1645, 128, 128, 8
        $region92: #{tpu_custom_call.1} parent=35 // pred_fallthru
          _
      $region36: #{tpu_custom_call.1} parent=5 // pred_fallthru
        _
      %p1669 = scmp.le.s32.totalorder 2, %s14
      // Predicated region
      $region93: #{tpu_custom_call.1} parent=5 // pred_check
        %p1670 = pneg %p1669
      $region94: #{tpu_custom_call.1} parent=5 // pred_check_branch
        %1672 = sbr.rel (%p1670) target = $region96
      $region95: #{tpu_custom_call.1} parent=5 // pred_region
        %s1673 = ssub.s32 %s14, 2
        // Predicated region
        $region97: #{tpu_custom_call.1} parent=95 // pred_check
          %p1674 = pneg %p141
        $region98: #{tpu_custom_call.1} parent=95 // pred_check_branch
          %1676 = sbr.rel (%p1674) target = $region100
        $region99: #{tpu_custom_call.1} parent=95 // pred_region
          %s1677 = sand.u32 %s126, 1
          %s1678 = scalar_lea.sflag [#allocation5], %s1677
          %s1679 = sand.u32 %s126, 1
          %s1680 = smul.addr %s1679, 256
          %s1681 = scalar_lea.vmem [#allocation4], %s1680
          %1683 = dma.done %s1678, 4096
        $region100: #{tpu_custom_call.1} parent=95 // pred_fallthru
          _
      $region96: #{tpu_custom_call.1} parent=5 // pred_fallthru
        _
    $region6: #{tpu_custom_call.1} parent=1 // loop_footer
      %s18 = sadd.s32 1, %s14
    $region7: #{tpu_custom_call.1} parent=1 // loop_footer_branch
      %13 = sbr.rel target = $region3
    $region8: #{tpu_custom_call.1} parent=1 // loop_exit
      _
    %1684 = vsyncpa [#allocation5], 1
    %s1685 = scalar_lea.sflag [#allocation5], 1
    %1686 = vsyncpa %s1685, 1
  %1687 = vsyncmov [#allocation3]
  %s1688 = vpop.sfrf %1687
  %p1689 = scmp.eq.s32.totalorder %s1688, 0
  %p1690 = pneg %p1689
  %1692 = shalt.err (%p1690)
  %s1693 = scalar_lea.sflag [#allocation3], 1
  %1694 = vsyncmov %s1693
  %s1695 = vpop.sfrf %1694
  %p1696 = scmp.eq.s32.totalorder %s1695, 0
  %p1697 = pneg %p1696
  %1699 = shalt.err (%p1697)

</llo_original>
